<compile_context>
chip_gen: v5e
topology: v5e:2x2
jax: 0.10.0
libtpu: 0.0.40
codegen_flags: <defaults>
</compile_context>

<pallas_src>
import math
import jax
import jax.numpy as jnp
from jax.experimental import pallas as pl
from jax.experimental.pallas import tpu as pltpu

# ----------------------------- config -------------------------------------
VOCAB = 100
MAX_POS = 512
TYPE_VOCAB = 2
HIDDEN = 32
NUM_HEADS = 2
HEAD_DIM = HIDDEN // NUM_HEADS
INTERMEDIATE = 64
NUM_LAYERS = 2
LN_EPS = 1e-12  # BERT default


# --------------------------- fused encoder kernel ---------------------------
def _encoder_kernel(
    x_ref,        # [B*L, H]   pre-LN embedding sum
    mask_ref,     # [B, L]     additive attention bias (0 or -1e9)
    emb_g_ref, emb_b_ref,              # [1, H]
    wqkv_ref, bqkv_ref,                # [NL, H, 3H], [NL, 1, 3H]
    wo_ref, bo_ref,                    # [NL, H, H],  [NL, 1, H]
    ln1_g_ref, ln1_b_ref,              # [NL, 1, H]
    w1_ref, b1_ref,                    # [NL, H, I],  [NL, 1, I]
    w2_ref, b2_ref,                    # [NL, I, H],  [NL, 1, H]
    ln2_g_ref, ln2_b_ref,              # [NL, 1, H]
    o_ref,        # [B*L, H]
    attn_ref,     # VMEM scratch [B*L, H] — per-layer attention head assembly
):
    B, L = mask_ref.shape
    scale = 1.0 / math.sqrt(HEAD_DIM)

    def layer_norm(x, g, b):
        mu = jnp.mean(x, axis=-1, keepdims=True)
        var = jnp.mean((x - mu) ** 2, axis=-1, keepdims=True)
        return (x - mu) * jax.lax.rsqrt(var + LN_EPS) * g + b

    def gelu(h):
        # TODO(synk): tanh-approx GELU; HF BERT default is exact erf GELU
        # (difference is ~1e-3 level).
        c = math.sqrt(2.0 / math.pi)
        return 0.5 * h * (1.0 + jnp.tanh(c * (h + 0.044715 * h * h * h)))

    # Embedding LayerNorm (dropout is identity in eval mode).
    x = layer_norm(x_ref[...], emb_g_ref[...], emb_b_ref[...])   # [B*L, H]

    # Unrolled layer loop — everything stays resident in VMEM/vregs.
    for li in range(NUM_LAYERS):
        # ---- packed QKV projection: one [B*L, H] @ [H, 3H] matmul ----------
        qkv = (
            jnp.dot(x, wqkv_ref[li], preferred_element_type=jnp.float32)
            + bqkv_ref[li]
        )                                                         # [B*L, 3H]

        # ---- per-(batch, head) attention with static slices ---------------
        for b in range(B):
            r0, r1 = b * L, (b + 1) * L
            mb = mask_ref[b : b + 1, :]                           # [1, L] key bias
            for h in range(NUM_HEADS):
                c0 = h * HEAD_DIM
                q = qkv[r0:r1, c0 : c0 + HEAD_DIM]                # [L, Dh]
                k = qkv[r0:r1, HIDDEN + c0 : HIDDEN + c0 + HEAD_DIM]
                v = qkv[r0:r1, 2 * HIDDEN + c0 : 2 * HIDDEN + c0 + HEAD_DIM]
                # q @ k^T without materializing a transpose.
                s = jax.lax.dot_general(
                    q, k, (((1,), (1,)), ((), ())),
                    preferred_element_type=jnp.float32,
                ) * scale + mb                                    # [L, L]
                s = s - jnp.max(s, axis=-1, keepdims=True)
                p = jnp.exp(s)
                p = p / jnp.sum(p, axis=-1, keepdims=True)
                attn_ref[r0:r1, c0 : c0 + HEAD_DIM] = jnp.dot(
                    p, v, preferred_element_type=jnp.float32
                )

        # ---- output projection + residual + LayerNorm (fused) -------------
        a = (
            jnp.dot(attn_ref[...], wo_ref[li], preferred_element_type=jnp.float32)
            + bo_ref[li]
        )
        x = layer_norm(a + x, ln1_g_ref[li], ln1_b_ref[li])

        # ---- FFN: GELU(x W1 + b1) W2 + b2, + residual + LayerNorm ----------
        f = gelu(
            jnp.dot(x, w1_ref[li], preferred_element_type=jnp.float32) + b1_ref[li]
        )
        f = jnp.dot(f, w2_ref[li], preferred_element_type=jnp.float32) + b2_ref[li]
        x = layer_norm(f + x, ln2_g_ref[li], ln2_b_ref[li])

    o_ref[...] = x


def _full_spec(shape):
    """Whole-array block for a grid=(1,) call."""
    return pl.BlockSpec(shape, lambda i: (0,) * len(shape))


def fused_encoder(x_emb, mask_bias, p):
    """x_emb: [B*L, H], mask_bias: [B, L] -> [B*L, H]."""
    BL, H = x_emb.shape
    B, L = mask_bias.shape
    operands = (
        x_emb, mask_bias,
        p["emb_ln_g"], p["emb_ln_b"],
        p["wqkv"], p["bqkv"],
        p["wo"], p["bo"],
        p["ln1_g"], p["ln1_b"],
        p["w1"], p["b1"],
        p["w2"], p["b2"],
        p["ln2_g"], p["ln2_b"],
    )
    return pl.pallas_call(
        _encoder_kernel,
        out_shape=jax.ShapeDtypeStruct((BL, H), jnp.float32),
        grid=(1,),
        in_specs=[_full_spec(op.shape) for op in operands],
        out_specs=_full_spec((BL, H)),
        scratch_shapes=[pltpu.VMEM((BL, H), jnp.float32)],
        compiler_params=pltpu.CompilerParams(dimension_semantics=("arbitrary",)),
    )(*operands)


# ----------------------------- model glue -----------------------------------
def encoder_forward(packed, context, padding_mask):
    """context, padding_mask: [seq_len, batch] -> [seq_len, batch, HIDDEN]."""
    S, B = context.shape
    assert S <= 512  # mirrors the module's roberta length assertion
    ids = context.T                                      # [B, S]
    mask = padding_mask.T.astype(jnp.float32)            # [B, S]

    # TODO(synk): embedding gather kept in plain JAX (no clean small-scale
    # Pallas gather); everything downstream runs in one fused Pallas kernel.
    h = (
        packed["word_emb"][ids]
        + packed["pos_emb"][:S][None, :, :]
        + packed["type_emb"][0][None, None, :]
    )                                                    # [B, S, H]
    x_emb = h.reshape(B * S, HIDDEN)
    mask_bias = (1.0 - mask) * -1e9                      # [B, S] additive bias

    out = fused_encoder(x_emb, mask_bias, packed)        # [B*S, H]
    return out.reshape(B, S, HIDDEN).transpose(1, 0, 2)  # [S, B, H]


def init_params(key):
    def dense(k, shape):
        return (jax.random.normal(k, shape, jnp.float32) * 0.02).astype(jnp.float32)

    keys = jax.random.split(key, 3 + NUM_LAYERS)
    params = {
        "word_emb": dense(keys[0], (VOCAB, HIDDEN)),
        "pos_emb": dense(keys[1], (MAX_POS, HIDDEN)),
        "type_emb": dense(keys[2], (TYPE_VOCAB, HIDDEN)),
        "emb_ln_g": jnp.ones((HIDDEN,), jnp.float32),
        "emb_ln_b": jnp.zeros((HIDDEN,), jnp.float32),
        "layers": [],
    }
    for li in range(NUM_LAYERS):
        lk = jax.random.split(keys[3 + li], 6)
        params["layers"].append(
            {
                "wq": dense(lk[0], (HIDDEN, HIDDEN)), "bq": jnp.zeros((HIDDEN,), jnp.float32),
                "wk": dense(lk[1], (HIDDEN, HIDDEN)), "bk": jnp.zeros((HIDDEN,), jnp.float32),
                "wv": dense(lk[2], (HIDDEN, HIDDEN)), "bv": jnp.zeros((HIDDEN,), jnp.float32),
                "wo": dense(lk[3], (HIDDEN, HIDDEN)), "bo": jnp.zeros((HIDDEN,), jnp.float32),
                "ln1_g": jnp.ones((HIDDEN,), jnp.float32), "ln1_b": jnp.zeros((HIDDEN,), jnp.float32),
                "w1": dense(lk[4], (HIDDEN, INTERMEDIATE)), "b1": jnp.zeros((INTERMEDIATE,), jnp.float32),
                "w2": dense(lk[5], (INTERMEDIATE, HIDDEN)), "b2": jnp.zeros((HIDDEN,), jnp.float32),
                "ln2_g": jnp.ones((HIDDEN,), jnp.float32), "ln2_b": jnp.zeros((HIDDEN,), jnp.float32),
            }
        )
    return params


def pack_params(params):
    """One-time packing: concat Q|K|V weights, stack layers, reshape biases.

    Done once outside the forward path so no per-call XLA glue remains.
    """
    L = params["layers"]
    packed = {
        "word_emb": params["word_emb"],
        "pos_emb": params["pos_emb"],
        "type_emb": params["type_emb"],
        "emb_ln_g": params["emb_ln_g"].reshape(1, HIDDEN),
        "emb_ln_b": params["emb_ln_b"].reshape(1, HIDDEN),
        "wqkv": jnp.stack(
            [jnp.concatenate([lp["wq"], lp["wk"], lp["wv"]], axis=1) for lp in L]
        ),                                                  # [NL, H, 3H]
        "bqkv": jnp.stack(
            [jnp.concatenate([lp["bq"], lp["bk"], lp["bv"]]).reshape(1, 3 * HIDDEN)
             for lp in L]
        ),                                                  # [NL, 1, 3H]
        "wo": jnp.stack([lp["wo"] for lp in L]),
        "bo": jnp.stack([lp["bo"].reshape(1, HIDDEN) for lp in L]),
        "ln1_g": jnp.stack([lp["ln1_g"].reshape(1, HIDDEN) for lp in L]),
        "ln1_b": jnp.stack([lp["ln1_b"].reshape(1, HIDDEN) for lp in L]),
        "w1": jnp.stack([lp["w1"] for lp in L]),
        "b1": jnp.stack([lp["b1"].reshape(1, INTERMEDIATE) for lp in L]),
        "w2": jnp.stack([lp["w2"] for lp in L]),
        "b2": jnp.stack([lp["b2"].reshape(1, HIDDEN) for lp in L]),
        "ln2_g": jnp.stack([lp["ln2_g"].reshape(1, HIDDEN) for lp in L]),
        "ln2_b": jnp.stack([lp["ln2_b"].reshape(1, HIDDEN) for lp in L]),
    }
    return jax.tree_util.tree_map(jax.block_until_ready, packed)


if __name__ == "__main__":
    key = jax.random.PRNGKey(0)
    pkey, ikey = jax.random.split(key)
    packed = pack_params(init_params(pkey))

    S, B = 8, 2  # [seq_len, batch]
    context = jax.random.randint(ikey, (S, B), 0, VOCAB, dtype=jnp.int32)
    padding_mask = jnp.ones((S, B), jnp.int32).at[-2:, 1].set(0)  # pad tail of batch 1

    out = encoder_forward(packed, context, padding_mask)
    out = jax.block_until_ready(out)
    assert out.shape == (S, B, HIDDEN) and out.dtype == jnp.float32
    assert bool(jnp.all(jnp.isfinite(out)))
    print("KERNEL_OK")
</pallas_src>

<mosaic_0001>
module attributes {stable_mosaic.version = 11 : i64} {
  func.func @_encoder_kernel(%arg0: i32, %arg1: memref<16x32xf32, #tpu.memory_space<vmem>>, %arg2: memref<2x8xf32, #tpu.memory_space<vmem>>, %arg3: memref<1x32xf32, #tpu.memory_space<vmem>>, %arg4: memref<1x32xf32, #tpu.memory_space<vmem>>, %arg5: memref<2x32x96xf32, #tpu.memory_space<vmem>>, %arg6: memref<2x1x96xf32, #tpu.memory_space<vmem>>, %arg7: memref<2x32x32xf32, #tpu.memory_space<vmem>>, %arg8: memref<2x1x32xf32, #tpu.memory_space<vmem>>, %arg9: memref<2x1x32xf32, #tpu.memory_space<vmem>>, %arg10: memref<2x1x32xf32, #tpu.memory_space<vmem>>, %arg11: memref<2x32x64xf32, #tpu.memory_space<vmem>>, %arg12: memref<2x1x64xf32, #tpu.memory_space<vmem>>, %arg13: memref<2x64x32xf32, #tpu.memory_space<vmem>>, %arg14: memref<2x1x32xf32, #tpu.memory_space<vmem>>, %arg15: memref<2x1x32xf32, #tpu.memory_space<vmem>>, %arg16: memref<2x1x32xf32, #tpu.memory_space<vmem>>, %arg17: memref<16x32xf32, #tpu.memory_space<vmem>>, %arg18: memref<16x32xf32, #tpu.memory_space<vmem>>) attributes {dimension_semantics = [#tpu.dimension_semantics<arbitrary>], iteration_bounds = array<i64: 1>, scalar_prefetch = 0 : i64, scratch_operands = 1 : i64, tpu.core_type = #tpu.core_type<tc>, window_params = [{pipeline_mode = #tpu.pipeline_mode<synchronous>, transform_indices = @transform_0, window_bounds = array<i64: 16, 32>}, {pipeline_mode = #tpu.pipeline_mode<synchronous>, transform_indices = @transform_1, window_bounds = array<i64: 2, 8>}, {pipeline_mode = #tpu.pipeline_mode<synchronous>, transform_indices = @transform_2, window_bounds = array<i64: 1, 32>}, {pipeline_mode = #tpu.pipeline_mode<synchronous>, transform_indices = @transform_3, window_bounds = array<i64: 1, 32>}, {pipeline_mode = #tpu.pipeline_mode<synchronous>, transform_indices = @transform_4, window_bounds = array<i64: 2, 32, 96>}, {pipeline_mode = #tpu.pipeline_mode<synchronous>, transform_indices = @transform_5, window_bounds = array<i64: 2, 1, 96>}, {pipeline_mode = #tpu.pipeline_mode<synchronous>, transform_indices = @transform_6, window_bounds = array<i64: 2, 32, 32>}, {pipeline_mode = #tpu.pipeline_mode<synchronous>, transform_indices = @transform_7, window_bounds = array<i64: 2, 1, 32>}, {pipeline_mode = #tpu.pipeline_mode<synchronous>, transform_indices = @transform_8, window_bounds = array<i64: 2, 1, 32>}, {pipeline_mode = #tpu.pipeline_mode<synchronous>, transform_indices = @transform_9, window_bounds = array<i64: 2, 1, 32>}, {pipeline_mode = #tpu.pipeline_mode<synchronous>, transform_indices = @transform_10, window_bounds = array<i64: 2, 32, 64>}, {pipeline_mode = #tpu.pipeline_mode<synchronous>, transform_indices = @transform_11, window_bounds = array<i64: 2, 1, 64>}, {pipeline_mode = #tpu.pipeline_mode<synchronous>, transform_indices = @transform_12, window_bounds = array<i64: 2, 64, 32>}, {pipeline_mode = #tpu.pipeline_mode<synchronous>, transform_indices = @transform_13, window_bounds = array<i64: 2, 1, 32>}, {pipeline_mode = #tpu.pipeline_mode<synchronous>, transform_indices = @transform_14, window_bounds = array<i64: 2, 1, 32>}, {pipeline_mode = #tpu.pipeline_mode<synchronous>, transform_indices = @transform_15, window_bounds = array<i64: 2, 1, 32>}, {pipeline_mode = #tpu.pipeline_mode<synchronous>, transform_indices = @transform_16, window_bounds = array<i64: 16, 32>}]} {
    %c0 = arith.constant 0 : index
    %c0_0 = arith.constant 0 : index
    %0 = vector.load %arg1[%c0, %c0_0] : memref<16x32xf32, #tpu.memory_space<vmem>>, vector<16x32xf32>
    %c0_1 = arith.constant 0 : index
    %c0_2 = arith.constant 0 : index
    %1 = vector.load %arg3[%c0_1, %c0_2] : memref<1x32xf32, #tpu.memory_space<vmem>>, vector<1x32xf32>
    %c0_3 = arith.constant 0 : index
    %c0_4 = arith.constant 0 : index
    %2 = vector.load %arg4[%c0_3, %c0_4] : memref<1x32xf32, #tpu.memory_space<vmem>>, vector<1x32xf32>
    %cst = arith.constant dense<0.000000e+00> : vector<16xf32>
    %3 = vector.multi_reduction <add>, %0, %cst [1] : vector<16x32xf32> to vector<16xf32>
    %4 = vector.shape_cast %3 : vector<16xf32> to vector<16x1xf32>
    %cst_5 = arith.constant 3.200000e+01 : f32
    %5 = vector.broadcast %cst_5 : f32 to vector<16x1xf32>
    %6 = arith.divf %4, %5 : vector<16x1xf32>
    %7 = vector.broadcast %6 : vector<16x1xf32> to vector<16x32xf32>
    %8 = arith.subf %0, %7 : vector<16x32xf32>
    %9 = arith.mulf %8, %8 : vector<16x32xf32>
    %cst_6 = arith.constant dense<0.000000e+00> : vector<16xf32>
    %10 = vector.multi_reduction <add>, %9, %cst_6 [1] : vector<16x32xf32> to vector<16xf32>
    %11 = vector.shape_cast %10 : vector<16xf32> to vector<16x1xf32>
    %cst_7 = arith.constant 3.200000e+01 : f32
    %12 = vector.broadcast %cst_7 : f32 to vector<16x1xf32>
    %13 = arith.divf %11, %12 : vector<16x1xf32>
    %14 = vector.broadcast %6 : vector<16x1xf32> to vector<16x32xf32>
    %15 = arith.subf %0, %14 : vector<16x32xf32>
    %cst_8 = arith.constant 9.99999996E-13 : f32
    %16 = vector.broadcast %cst_8 : f32 to vector<16x1xf32>
    %17 = arith.addf %13, %16 : vector<16x1xf32>
    %18 = math.rsqrt %17 : vector<16x1xf32>
    %19 = vector.broadcast %18 : vector<16x1xf32> to vector<16x32xf32>
    %20 = arith.mulf %15, %19 : vector<16x32xf32>
    %21 = vector.broadcast %1 : vector<1x32xf32> to vector<16x32xf32>
    %22 = arith.mulf %20, %21 : vector<16x32xf32>
    %23 = vector.broadcast %2 : vector<1x32xf32> to vector<16x32xf32>
    %24 = arith.addf %22, %23 : vector<16x32xf32>
    %c0_9 = arith.constant 0 : index
    %c0_10 = arith.constant 0 : index
    %c0_11 = arith.constant 0 : index
    %25 = vector.load %arg5[%c0_9, %c0_10, %c0_11] : memref<2x32x96xf32, #tpu.memory_space<vmem>>, vector<1x32x96xf32>
    %26 = vector.shape_cast %25 : vector<1x32x96xf32> to vector<32x96xf32>
    %cst_12 = arith.constant dense<0.000000e+00> : vector<16x96xf32>
    %27 = tpu.matmul %24, %26, %cst_12 {dimension_numbers = #tpu.dot_dimension_numbers<[1], [0], [0], [1], [0, 0, 1, 1], [], []>} : vector<16x32xf32>, vector<32x96xf32>, vector<16x96xf32> -> vector<16x96xf32>
    %c0_13 = arith.constant 0 : index
    %c0_14 = arith.constant 0 : index
    %c0_15 = arith.constant 0 : index
    %28 = vector.load %arg6[%c0_13, %c0_14, %c0_15] : memref<2x1x96xf32, #tpu.memory_space<vmem>>, vector<1x1x96xf32>
    %29 = vector.shape_cast %28 : vector<1x1x96xf32> to vector<1x96xf32>
    %30 = vector.broadcast %29 : vector<1x96xf32> to vector<16x96xf32>
    %31 = arith.addf %27, %30 : vector<16x96xf32>
    %c0_16 = arith.constant 0 : index
    %c0_17 = arith.constant 0 : index
    %32 = vector.load %arg2[%c0_16, %c0_17] : memref<2x8xf32, #tpu.memory_space<vmem>>, vector<1x8xf32>
    %33 = vector.extract_strided_slice %31 {offsets = [0, 0], sizes = [8, 16], strides = [1, 1]} : vector<16x96xf32> to vector<8x16xf32>
    %34 = vector.extract_strided_slice %31 {offsets = [0, 32], sizes = [8, 16], strides = [1, 1]} : vector<16x96xf32> to vector<8x16xf32>
    %35 = vector.extract_strided_slice %31 {offsets = [0, 64], sizes = [8, 16], strides = [1, 1]} : vector<16x96xf32> to vector<8x16xf32>
    %cst_18 = arith.constant dense<0.000000e+00> : vector<8x8xf32>
    %36 = tpu.matmul %33, %34, %cst_18 {dimension_numbers = #tpu.dot_dimension_numbers<[1], [1], [0], [0], [0, 0, 1, 0], [], []>} : vector<8x16xf32>, vector<8x16xf32>, vector<8x8xf32> -> vector<8x8xf32>
    %cst_19 = arith.constant 2.500000e-01 : f32
    %37 = vector.broadcast %cst_19 : f32 to vector<8x8xf32>
    %38 = arith.mulf %36, %37 : vector<8x8xf32>
    %39 = vector.broadcast %32 : vector<1x8xf32> to vector<8x8xf32>
    %40 = arith.addf %38, %39 : vector<8x8xf32>
    %cst_20 = arith.constant dense<0xFF800000> : vector<8xf32>
    %41 = vector.multi_reduction <maximumf>, %40, %cst_20 [1] : vector<8x8xf32> to vector<8xf32>
    %42 = vector.shape_cast %41 : vector<8xf32> to vector<8x1xf32>
    %43 = vector.broadcast %42 : vector<8x1xf32> to vector<8x8xf32>
    %44 = arith.subf %40, %43 : vector<8x8xf32>
    %45 = math.exp %44 : vector<8x8xf32>
    %cst_21 = arith.constant dense<0.000000e+00> : vector<8xf32>
    %46 = vector.multi_reduction <add>, %45, %cst_21 [1] : vector<8x8xf32> to vector<8xf32>
    %47 = vector.shape_cast %46 : vector<8xf32> to vector<8x1xf32>
    %48 = vector.broadcast %47 : vector<8x1xf32> to vector<8x8xf32>
    %49 = arith.divf %45, %48 : vector<8x8xf32>
    %cst_22 = arith.constant dense<0.000000e+00> : vector<8x16xf32>
    %50 = tpu.matmul %49, %35, %cst_22 {dimension_numbers = #tpu.dot_dimension_numbers<[1], [0], [0], [1], [0, 0, 1, 1], [], []>} : vector<8x8xf32>, vector<8x16xf32>, vector<8x16xf32> -> vector<8x16xf32>
    %c0_23 = arith.constant 0 : index
    %c0_24 = arith.constant 0 : index
    %51 = vector.load %arg18[%c0_23, %c0_24] : memref<16x32xf32, #tpu.memory_space<vmem>>, vector<8x16xf32>
    tpu.vector_store %arg18[%c0_23, %c0_24], %50 {strides = array<i32>} : memref<16x32xf32, #tpu.memory_space<vmem>>, vector<8x16xf32>,
    %52 = vector.extract_strided_slice %31 {offsets = [0, 16], sizes = [8, 16], strides = [1, 1]} : vector<16x96xf32> to vector<8x16xf32>
    %53 = vector.extract_strided_slice %31 {offsets = [0, 48], sizes = [8, 16], strides = [1, 1]} : vector<16x96xf32> to vector<8x16xf32>
    %54 = vector.extract_strided_slice %31 {offsets = [0, 80], sizes = [8, 16], strides = [1, 1]} : vector<16x96xf32> to vector<8x16xf32>
    %cst_25 = arith.constant dense<0.000000e+00> : vector<8x8xf32>
    %55 = tpu.matmul %52, %53, %cst_25 {dimension_numbers = #tpu.dot_dimension_numbers<[1], [1], [0], [0], [0, 0, 1, 0], [], []>} : vector<8x16xf32>, vector<8x16xf32>, vector<8x8xf32> -> vector<8x8xf32>
    %cst_26 = arith.constant 2.500000e-01 : f32
    %56 = vector.broadcast %cst_26 : f32 to vector<8x8xf32>
    %57 = arith.mulf %55, %56 : vector<8x8xf32>
    %58 = vector.broadcast %32 : vector<1x8xf32> to vector<8x8xf32>
    %59 = arith.addf %57, %58 : vector<8x8xf32>
    %cst_27 = arith.constant dense<0xFF800000> : vector<8xf32>
    %60 = vector.multi_reduction <maximumf>, %59, %cst_27 [1] : vector<8x8xf32> to vector<8xf32>
    %61 = vector.shape_cast %60 : vector<8xf32> to vector<8x1xf32>
    %62 = vector.broadcast %61 : vector<8x1xf32> to vector<8x8xf32>
    %63 = arith.subf %59, %62 : vector<8x8xf32>
    %64 = math.exp %63 : vector<8x8xf32>
    %cst_28 = arith.constant dense<0.000000e+00> : vector<8xf32>
    %65 = vector.multi_reduction <add>, %64, %cst_28 [1] : vector<8x8xf32> to vector<8xf32>
    %66 = vector.shape_cast %65 : vector<8xf32> to vector<8x1xf32>
    %67 = vector.broadcast %66 : vector<8x1xf32> to vector<8x8xf32>
    %68 = arith.divf %64, %67 : vector<8x8xf32>
    %cst_29 = arith.constant dense<0.000000e+00> : vector<8x16xf32>
    %69 = tpu.matmul %68, %54, %cst_29 {dimension_numbers = #tpu.dot_dimension_numbers<[1], [0], [0], [1], [0, 0, 1, 1], [], []>} : vector<8x8xf32>, vector<8x16xf32>, vector<8x16xf32> -> vector<8x16xf32>
    %c0_30 = arith.constant 0 : index
    %c16 = arith.constant 16 : index
    %70 = vector.load %arg18[%c0_30, %c16] : memref<16x32xf32, #tpu.memory_space<vmem>>, vector<8x16xf32>
    tpu.vector_store %arg18[%c0_30, %c16], %69 {strides = array<i32>} : memref<16x32xf32, #tpu.memory_space<vmem>>, vector<8x16xf32>,
    %c1 = arith.constant 1 : index
    %c0_31 = arith.constant 0 : index
    %71 = vector.load %arg2[%c1, %c0_31] : memref<2x8xf32, #tpu.memory_space<vmem>>, vector<1x8xf32>
    %72 = vector.extract_strided_slice %31 {offsets = [8, 0], sizes = [8, 16], strides = [1, 1]} : vector<16x96xf32> to vector<8x16xf32>
    %73 = vector.extract_strided_slice %31 {offsets = [8, 32], sizes = [8, 16], strides = [1, 1]} : vector<16x96xf32> to vector<8x16xf32>
    %74 = vector.extract_strided_slice %31 {offsets = [8, 64], sizes = [8, 16], strides = [1, 1]} : vector<16x96xf32> to vector<8x16xf32>
    %cst_32 = arith.constant dense<0.000000e+00> : vector<8x8xf32>
    %75 = tpu.matmul %72, %73, %cst_32 {dimension_numbers = #tpu.dot_dimension_numbers<[1], [1], [0], [0], [0, 0, 1, 0], [], []>} : vector<8x16xf32>, vector<8x16xf32>, vector<8x8xf32> -> vector<8x8xf32>
    %cst_33 = arith.constant 2.500000e-01 : f32
    %76 = vector.broadcast %cst_33 : f32 to vector<8x8xf32>
    %77 = arith.mulf %75, %76 : vector<8x8xf32>
    %78 = vector.broadcast %71 : vector<1x8xf32> to vector<8x8xf32>
    %79 = arith.addf %77, %78 : vector<8x8xf32>
    %cst_34 = arith.constant dense<0xFF800000> : vector<8xf32>
    %80 = vector.multi_reduction <maximumf>, %79, %cst_34 [1] : vector<8x8xf32> to vector<8xf32>
    %81 = vector.shape_cast %80 : vector<8xf32> to vector<8x1xf32>
    %82 = vector.broadcast %81 : vector<8x1xf32> to vector<8x8xf32>
    %83 = arith.subf %79, %82 : vector<8x8xf32>
    %84 = math.exp %83 : vector<8x8xf32>
    %cst_35 = arith.constant dense<0.000000e+00> : vector<8xf32>
    %85 = vector.multi_reduction <add>, %84, %cst_35 [1] : vector<8x8xf32> to vector<8xf32>
    %86 = vector.shape_cast %85 : vector<8xf32> to vector<8x1xf32>
    %87 = vector.broadcast %86 : vector<8x1xf32> to vector<8x8xf32>
    %88 = arith.divf %84, %87 : vector<8x8xf32>
    %cst_36 = arith.constant dense<0.000000e+00> : vector<8x16xf32>
    %89 = tpu.matmul %88, %74, %cst_36 {dimension_numbers = #tpu.dot_dimension_numbers<[1], [0], [0], [1], [0, 0, 1, 1], [], []>} : vector<8x8xf32>, vector<8x16xf32>, vector<8x16xf32> -> vector<8x16xf32>
    %c8 = arith.constant 8 : index
    %c0_37 = arith.constant 0 : index
    %90 = vector.load %arg18[%c8, %c0_37] : memref<16x32xf32, #tpu.memory_space<vmem>>, vector<8x16xf32>
    tpu.vector_store %arg18[%c8, %c0_37], %89 {strides = array<i32>} : memref<16x32xf32, #tpu.memory_space<vmem>>, vector<8x16xf32>,
    %91 = vector.extract_strided_slice %31 {offsets = [8, 16], sizes = [8, 16], strides = [1, 1]} : vector<16x96xf32> to vector<8x16xf32>
    %92 = vector.extract_strided_slice %31 {offsets = [8, 48], sizes = [8, 16], strides = [1, 1]} : vector<16x96xf32> to vector<8x16xf32>
    %93 = vector.extract_strided_slice %31 {offsets = [8, 80], sizes = [8, 16], strides = [1, 1]} : vector<16x96xf32> to vector<8x16xf32>
    %cst_38 = arith.constant dense<0.000000e+00> : vector<8x8xf32>
    %94 = tpu.matmul %91, %92, %cst_38 {dimension_numbers = #tpu.dot_dimension_numbers<[1], [1], [0], [0], [0, 0, 1, 0], [], []>} : vector<8x16xf32>, vector<8x16xf32>, vector<8x8xf32> -> vector<8x8xf32>
    %cst_39 = arith.constant 2.500000e-01 : f32
    %95 = vector.broadcast %cst_39 : f32 to vector<8x8xf32>
    %96 = arith.mulf %94, %95 : vector<8x8xf32>
    %97 = vector.broadcast %71 : vector<1x8xf32> to vector<8x8xf32>
    %98 = arith.addf %96, %97 : vector<8x8xf32>
    %cst_40 = arith.constant dense<0xFF800000> : vector<8xf32>
    %99 = vector.multi_reduction <maximumf>, %98, %cst_40 [1] : vector<8x8xf32> to vector<8xf32>
    %100 = vector.shape_cast %99 : vector<8xf32> to vector<8x1xf32>
    %101 = vector.broadcast %100 : vector<8x1xf32> to vector<8x8xf32>
    %102 = arith.subf %98, %101 : vector<8x8xf32>
    %103 = math.exp %102 : vector<8x8xf32>
    %cst_41 = arith.constant dense<0.000000e+00> : vector<8xf32>
    %104 = vector.multi_reduction <add>, %103, %cst_41 [1] : vector<8x8xf32> to vector<8xf32>
    %105 = vector.shape_cast %104 : vector<8xf32> to vector<8x1xf32>
    %106 = vector.broadcast %105 : vector<8x1xf32> to vector<8x8xf32>
    %107 = arith.divf %103, %106 : vector<8x8xf32>
    %cst_42 = arith.constant dense<0.000000e+00> : vector<8x16xf32>
    %108 = tpu.matmul %107, %93, %cst_42 {dimension_numbers = #tpu.dot_dimension_numbers<[1], [0], [0], [1], [0, 0, 1, 1], [], []>} : vector<8x8xf32>, vector<8x16xf32>, vector<8x16xf32> -> vector<8x16xf32>
    %c8_43 = arith.constant 8 : index
    %c16_44 = arith.constant 16 : index
    %109 = vector.load %arg18[%c8_43, %c16_44] : memref<16x32xf32, #tpu.memory_space<vmem>>, vector<8x16xf32>
    tpu.vector_store %arg18[%c8_43, %c16_44], %108 {strides = array<i32>} : memref<16x32xf32, #tpu.memory_space<vmem>>, vector<8x16xf32>,
    %c0_45 = arith.constant 0 : index
    %c0_46 = arith.constant 0 : index
    %110 = vector.load %arg18[%c0_45, %c0_46] : memref<16x32xf32, #tpu.memory_space<vmem>>, vector<16x32xf32>
    %c0_47 = arith.constant 0 : index
    %c0_48 = arith.constant 0 : index
    %c0_49 = arith.constant 0 : index
    %111 = vector.load %arg7[%c0_47, %c0_48, %c0_49] : memref<2x32x32xf32, #tpu.memory_space<vmem>>, vector<1x32x32xf32>
    %112 = vector.shape_cast %111 : vector<1x32x32xf32> to vector<32x32xf32>
    %cst_50 = arith.constant dense<0.000000e+00> : vector<16x32xf32>
    %113 = tpu.matmul %110, %112, %cst_50 {dimension_numbers = #tpu.dot_dimension_numbers<[1], [0], [0], [1], [0, 0, 1, 1], [], []>} : vector<16x32xf32>, vector<32x32xf32>, vector<16x32xf32> -> vector<16x32xf32>
    %c0_51 = arith.constant 0 : index
    %c0_52 = arith.constant 0 : index
    %c0_53 = arith.constant 0 : index
    %114 = vector.load %arg8[%c0_51, %c0_52, %c0_53] : memref<2x1x32xf32, #tpu.memory_space<vmem>>, vector<1x1x32xf32>
    %115 = vector.shape_cast %114 : vector<1x1x32xf32> to vector<1x32xf32>
    %116 = vector.broadcast %115 : vector<1x32xf32> to vector<16x32xf32>
    %117 = arith.addf %113, %116 : vector<16x32xf32>
    %118 = arith.addf %117, %24 : vector<16x32xf32>
    %c0_54 = arith.constant 0 : index
    %c0_55 = arith.constant 0 : index
    %c0_56 = arith.constant 0 : index
    %119 = vector.load %arg9[%c0_54, %c0_55, %c0_56] : memref<2x1x32xf32, #tpu.memory_space<vmem>>, vector<1x1x32xf32>
    %120 = vector.shape_cast %119 : vector<1x1x32xf32> to vector<1x32xf32>
    %c0_57 = arith.constant 0 : index
    %c0_58 = arith.constant 0 : index
    %c0_59 = arith.constant 0 : index
    %121 = vector.load %arg10[%c0_57, %c0_58, %c0_59] : memref<2x1x32xf32, #tpu.memory_space<vmem>>, vector<1x1x32xf32>
    %122 = vector.shape_cast %121 : vector<1x1x32xf32> to vector<1x32xf32>
    %cst_60 = arith.constant dense<0.000000e+00> : vector<16xf32>
    %123 = vector.multi_reduction <add>, %118, %cst_60 [1] : vector<16x32xf32> to vector<16xf32>
    %124 = vector.shape_cast %123 : vector<16xf32> to vector<16x1xf32>
    %cst_61 = arith.constant 3.200000e+01 : f32
    %125 = vector.broadcast %cst_61 : f32 to vector<16x1xf32>
    %126 = arith.divf %124, %125 : vector<16x1xf32>
    %127 = vector.broadcast %126 : vector<16x1xf32> to vector<16x32xf32>
    %128 = arith.subf %118, %127 : vector<16x32xf32>
    %129 = arith.mulf %128, %128 : vector<16x32xf32>
    %cst_62 = arith.constant dense<0.000000e+00> : vector<16xf32>
    %130 = vector.multi_reduction <add>, %129, %cst_62 [1] : vector<16x32xf32> to vector<16xf32>
    %131 = vector.shape_cast %130 : vector<16xf32> to vector<16x1xf32>
    %cst_63 = arith.constant 3.200000e+01 : f32
    %132 = vector.broadcast %cst_63 : f32 to vector<16x1xf32>
    %133 = arith.divf %131, %132 : vector<16x1xf32>
    %134 = vector.broadcast %126 : vector<16x1xf32> to vector<16x32xf32>
    %135 = arith.subf %118, %134 : vector<16x32xf32>
    %cst_64 = arith.constant 9.99999996E-13 : f32
    %136 = vector.broadcast %cst_64 : f32 to vector<16x1xf32>
    %137 = arith.addf %133, %136 : vector<16x1xf32>
    %138 = math.rsqrt %137 : vector<16x1xf32>
    %139 = vector.broadcast %138 : vector<16x1xf32> to vector<16x32xf32>
    %140 = arith.mulf %135, %139 : vector<16x32xf32>
    %141 = vector.broadcast %120 : vector<1x32xf32> to vector<16x32xf32>
    %142 = arith.mulf %140, %141 : vector<16x32xf32>
    %143 = vector.broadcast %122 : vector<1x32xf32> to vector<16x32xf32>
    %144 = arith.addf %142, %143 : vector<16x32xf32>
    %c0_65 = arith.constant 0 : index
    %c0_66 = arith.constant 0 : index
    %c0_67 = arith.constant 0 : index
    %145 = vector.load %arg11[%c0_65, %c0_66, %c0_67] : memref<2x32x64xf32, #tpu.memory_space<vmem>>, vector<1x32x64xf32>
    %146 = vector.shape_cast %145 : vector<1x32x64xf32> to vector<32x64xf32>
    %cst_68 = arith.constant dense<0.000000e+00> : vector<16x64xf32>
    %147 = tpu.matmul %144, %146, %cst_68 {dimension_numbers = #tpu.dot_dimension_numbers<[1], [0], [0], [1], [0, 0, 1, 1], [], []>} : vector<16x32xf32>, vector<32x64xf32>, vector<16x64xf32> -> vector<16x64xf32>
    %c0_69 = arith.constant 0 : index
    %c0_70 = arith.constant 0 : index
    %c0_71 = arith.constant 0 : index
    %148 = vector.load %arg12[%c0_69, %c0_70, %c0_71] : memref<2x1x64xf32, #tpu.memory_space<vmem>>, vector<1x1x64xf32>
    %149 = vector.shape_cast %148 : vector<1x1x64xf32> to vector<1x64xf32>
    %150 = vector.broadcast %149 : vector<1x64xf32> to vector<16x64xf32>
    %151 = arith.addf %147, %150 : vector<16x64xf32>
    %cst_72 = arith.constant 5.000000e-01 : f32
    %152 = vector.broadcast %cst_72 : f32 to vector<16x64xf32>
    %153 = arith.mulf %152, %151 : vector<16x64xf32>
    %cst_73 = arith.constant 4.471500e-02 : f32
    %154 = vector.broadcast %cst_73 : f32 to vector<16x64xf32>
    %155 = arith.mulf %154, %151 : vector<16x64xf32>
    %156 = arith.mulf %155, %151 : vector<16x64xf32>
    %157 = arith.mulf %156, %151 : vector<16x64xf32>
    %158 = arith.addf %151, %157 : vector<16x64xf32>
    %cst_74 = arith.constant 0.797884583 : f32
    %159 = vector.broadcast %cst_74 : f32 to vector<16x64xf32>
    %160 = arith.mulf %159, %158 : vector<16x64xf32>
    %161 = math.tanh %160 : vector<16x64xf32>
    %cst_75 = arith.constant 1.000000e+00 : f32
    %162 = vector.broadcast %cst_75 : f32 to vector<16x64xf32>
    %163 = arith.addf %162, %161 : vector<16x64xf32>
    %164 = arith.mulf %153, %163 : vector<16x64xf32>
    %c0_76 = arith.constant 0 : index
    %c0_77 = arith.constant 0 : index
    %c0_78 = arith.constant 0 : index
    %165 = vector.load %arg13[%c0_76, %c0_77, %c0_78] : memref<2x64x32xf32, #tpu.memory_space<vmem>>, vector<1x64x32xf32>
    %166 = vector.shape_cast %165 : vector<1x64x32xf32> to vector<64x32xf32>
    %cst_79 = arith.constant dense<0.000000e+00> : vector<16x32xf32>
    %167 = tpu.matmul %164, %166, %cst_79 {dimension_numbers = #tpu.dot_dimension_numbers<[1], [0], [0], [1], [0, 0, 1, 1], [], []>} : vector<16x64xf32>, vector<64x32xf32>, vector<16x32xf32> -> vector<16x32xf32>
    %c0_80 = arith.constant 0 : index
    %c0_81 = arith.constant 0 : index
    %c0_82 = arith.constant 0 : index
    %168 = vector.load %arg14[%c0_80, %c0_81, %c0_82] : memref<2x1x32xf32, #tpu.memory_space<vmem>>, vector<1x1x32xf32>
    %169 = vector.shape_cast %168 : vector<1x1x32xf32> to vector<1x32xf32>
    %170 = vector.broadcast %169 : vector<1x32xf32> to vector<16x32xf32>
    %171 = arith.addf %167, %170 : vector<16x32xf32>
    %172 = arith.addf %171, %144 : vector<16x32xf32>
    %c0_83 = arith.constant 0 : index
    %c0_84 = arith.constant 0 : index
    %c0_85 = arith.constant 0 : index
    %173 = vector.load %arg15[%c0_83, %c0_84, %c0_85] : memref<2x1x32xf32, #tpu.memory_space<vmem>>, vector<1x1x32xf32>
    %174 = vector.shape_cast %173 : vector<1x1x32xf32> to vector<1x32xf32>
    %c0_86 = arith.constant 0 : index
    %c0_87 = arith.constant 0 : index
    %c0_88 = arith.constant 0 : index
    %175 = vector.load %arg16[%c0_86, %c0_87, %c0_88] : memref<2x1x32xf32, #tpu.memory_space<vmem>>, vector<1x1x32xf32>
    %176 = vector.shape_cast %175 : vector<1x1x32xf32> to vector<1x32xf32>
    %cst_89 = arith.constant dense<0.000000e+00> : vector<16xf32>
    %177 = vector.multi_reduction <add>, %172, %cst_89 [1] : vector<16x32xf32> to vector<16xf32>
    %178 = vector.shape_cast %177 : vector<16xf32> to vector<16x1xf32>
    %cst_90 = arith.constant 3.200000e+01 : f32
    %179 = vector.broadcast %cst_90 : f32 to vector<16x1xf32>
    %180 = arith.divf %178, %179 : vector<16x1xf32>
    %181 = vector.broadcast %180 : vector<16x1xf32> to vector<16x32xf32>
    %182 = arith.subf %172, %181 : vector<16x32xf32>
    %183 = arith.mulf %182, %182 : vector<16x32xf32>
    %cst_91 = arith.constant dense<0.000000e+00> : vector<16xf32>
    %184 = vector.multi_reduction <add>, %183, %cst_91 [1] : vector<16x32xf32> to vector<16xf32>
    %185 = vector.shape_cast %184 : vector<16xf32> to vector<16x1xf32>
    %cst_92 = arith.constant 3.200000e+01 : f32
    %186 = vector.broadcast %cst_92 : f32 to vector<16x1xf32>
    %187 = arith.divf %185, %186 : vector<16x1xf32>
    %188 = vector.broadcast %180 : vector<16x1xf32> to vector<16x32xf32>
    %189 = arith.subf %172, %188 : vector<16x32xf32>
    %cst_93 = arith.constant 9.99999996E-13 : f32
    %190 = vector.broadcast %cst_93 : f32 to vector<16x1xf32>
    %191 = arith.addf %187, %190 : vector<16x1xf32>
    %192 = math.rsqrt %191 : vector<16x1xf32>
    %193 = vector.broadcast %192 : vector<16x1xf32> to vector<16x32xf32>
    %194 = arith.mulf %189, %193 : vector<16x32xf32>
    %195 = vector.broadcast %174 : vector<1x32xf32> to vector<16x32xf32>
    %196 = arith.mulf %194, %195 : vector<16x32xf32>
    %197 = vector.broadcast %176 : vector<1x32xf32> to vector<16x32xf32>
    %198 = arith.addf %196, %197 : vector<16x32xf32>
    %c1_94 = arith.constant 1 : index
    %c0_95 = arith.constant 0 : index
    %c0_96 = arith.constant 0 : index
    %199 = vector.load %arg5[%c1_94, %c0_95, %c0_96] : memref<2x32x96xf32, #tpu.memory_space<vmem>>, vector<1x32x96xf32>
    %200 = vector.shape_cast %199 : vector<1x32x96xf32> to vector<32x96xf32>
    %cst_97 = arith.constant dense<0.000000e+00> : vector<16x96xf32>
    %201 = tpu.matmul %198, %200, %cst_97 {dimension_numbers = #tpu.dot_dimension_numbers<[1], [0], [0], [1], [0, 0, 1, 1], [], []>} : vector<16x32xf32>, vector<32x96xf32>, vector<16x96xf32> -> vector<16x96xf32>
    %c1_98 = arith.constant 1 : index
    %c0_99 = arith.constant 0 : index
    %c0_100 = arith.constant 0 : index
    %202 = vector.load %arg6[%c1_98, %c0_99, %c0_100] : memref<2x1x96xf32, #tpu.memory_space<vmem>>, vector<1x1x96xf32>
    %203 = vector.shape_cast %202 : vector<1x1x96xf32> to vector<1x96xf32>
    %204 = vector.broadcast %203 : vector<1x96xf32> to vector<16x96xf32>
    %205 = arith.addf %201, %204 : vector<16x96xf32>
    %c0_101 = arith.constant 0 : index
    %c0_102 = arith.constant 0 : index
    %206 = vector.load %arg2[%c0_101, %c0_102] : memref<2x8xf32, #tpu.memory_space<vmem>>, vector<1x8xf32>
    %207 = vector.extract_strided_slice %205 {offsets = [0, 0], sizes = [8, 16], strides = [1, 1]} : vector<16x96xf32> to vector<8x16xf32>
    %208 = vector.extract_strided_slice %205 {offsets = [0, 32], sizes = [8, 16], strides = [1, 1]} : vector<16x96xf32> to vector<8x16xf32>
    %209 = vector.extract_strided_slice %205 {offsets = [0, 64], sizes = [8, 16], strides = [1, 1]} : vector<16x96xf32> to vector<8x16xf32>
    %cst_103 = arith.constant dense<0.000000e+00> : vector<8x8xf32>
    %210 = tpu.matmul %207, %208, %cst_103 {dimension_numbers = #tpu.dot_dimension_numbers<[1], [1], [0], [0], [0, 0, 1, 0], [], []>} : vector<8x16xf32>, vector<8x16xf32>, vector<8x8xf32> -> vector<8x8xf32>
    %cst_104 = arith.constant 2.500000e-01 : f32
    %211 = vector.broadcast %cst_104 : f32 to vector<8x8xf32>
    %212 = arith.mulf %210, %211 : vector<8x8xf32>
    %213 = vector.broadcast %206 : vector<1x8xf32> to vector<8x8xf32>
    %214 = arith.addf %212, %213 : vector<8x8xf32>
    %cst_105 = arith.constant dense<0xFF800000> : vector<8xf32>
    %215 = vector.multi_reduction <maximumf>, %214, %cst_105 [1] : vector<8x8xf32> to vector<8xf32>
    %216 = vector.shape_cast %215 : vector<8xf32> to vector<8x1xf32>
    %217 = vector.broadcast %216 : vector<8x1xf32> to vector<8x8xf32>
    %218 = arith.subf %214, %217 : vector<8x8xf32>
    %219 = math.exp %218 : vector<8x8xf32>
    %cst_106 = arith.constant dense<0.000000e+00> : vector<8xf32>
    %220 = vector.multi_reduction <add>, %219, %cst_106 [1] : vector<8x8xf32> to vector<8xf32>
    %221 = vector.shape_cast %220 : vector<8xf32> to vector<8x1xf32>
    %222 = vector.broadcast %221 : vector<8x1xf32> to vector<8x8xf32>
    %223 = arith.divf %219, %222 : vector<8x8xf32>
    %cst_107 = arith.constant dense<0.000000e+00> : vector<8x16xf32>
    %224 = tpu.matmul %223, %209, %cst_107 {dimension_numbers = #tpu.dot_dimension_numbers<[1], [0], [0], [1], [0, 0, 1, 1], [], []>} : vector<8x8xf32>, vector<8x16xf32>, vector<8x16xf32> -> vector<8x16xf32>
    %c0_108 = arith.constant 0 : index
    %c0_109 = arith.constant 0 : index
    %225 = vector.load %arg18[%c0_108, %c0_109] : memref<16x32xf32, #tpu.memory_space<vmem>>, vector<8x16xf32>
    tpu.vector_store %arg18[%c0_108, %c0_109], %224 {strides = array<i32>} : memref<16x32xf32, #tpu.memory_space<vmem>>, vector<8x16xf32>,
    %226 = vector.extract_strided_slice %205 {offsets = [0, 16], sizes = [8, 16], strides = [1, 1]} : vector<16x96xf32> to vector<8x16xf32>
    %227 = vector.extract_strided_slice %205 {offsets = [0, 48], sizes = [8, 16], strides = [1, 1]} : vector<16x96xf32> to vector<8x16xf32>
    %228 = vector.extract_strided_slice %205 {offsets = [0, 80], sizes = [8, 16], strides = [1, 1]} : vector<16x96xf32> to vector<8x16xf32>
    %cst_110 = arith.constant dense<0.000000e+00> : vector<8x8xf32>
    %229 = tpu.matmul %226, %227, %cst_110 {dimension_numbers = #tpu.dot_dimension_numbers<[1], [1], [0], [0], [0, 0, 1, 0], [], []>} : vector<8x16xf32>, vector<8x16xf32>, vector<8x8xf32> -> vector<8x8xf32>
    %cst_111 = arith.constant 2.500000e-01 : f32
    %230 = vector.broadcast %cst_111 : f32 to vector<8x8xf32>
    %231 = arith.mulf %229, %230 : vector<8x8xf32>
    %232 = vector.broadcast %206 : vector<1x8xf32> to vector<8x8xf32>
    %233 = arith.addf %231, %232 : vector<8x8xf32>
    %cst_112 = arith.constant dense<0xFF800000> : vector<8xf32>
    %234 = vector.multi_reduction <maximumf>, %233, %cst_112 [1] : vector<8x8xf32> to vector<8xf32>
    %235 = vector.shape_cast %234 : vector<8xf32> to vector<8x1xf32>
    %236 = vector.broadcast %235 : vector<8x1xf32> to vector<8x8xf32>
    %237 = arith.subf %233, %236 : vector<8x8xf32>
    %238 = math.exp %237 : vector<8x8xf32>
    %cst_113 = arith.constant dense<0.000000e+00> : vector<8xf32>
    %239 = vector.multi_reduction <add>, %238, %cst_113 [1] : vector<8x8xf32> to vector<8xf32>
    %240 = vector.shape_cast %239 : vector<8xf32> to vector<8x1xf32>
    %241 = vector.broadcast %240 : vector<8x1xf32> to vector<8x8xf32>
    %242 = arith.divf %238, %241 : vector<8x8xf32>
    %cst_114 = arith.constant dense<0.000000e+00> : vector<8x16xf32>
    %243 = tpu.matmul %242, %228, %cst_114 {dimension_numbers = #tpu.dot_dimension_numbers<[1], [0], [0], [1], [0, 0, 1, 1], [], []>} : vector<8x8xf32>, vector<8x16xf32>, vector<8x16xf32> -> vector<8x16xf32>
    %c0_115 = arith.constant 0 : index
    %c16_116 = arith.constant 16 : index
    %244 = vector.load %arg18[%c0_115, %c16_116] : memref<16x32xf32, #tpu.memory_space<vmem>>, vector<8x16xf32>
    tpu.vector_store %arg18[%c0_115, %c16_116], %243 {strides = array<i32>} : memref<16x32xf32, #tpu.memory_space<vmem>>, vector<8x16xf32>,
    %c1_117 = arith.constant 1 : index
    %c0_118 = arith.constant 0 : index
    %245 = vector.load %arg2[%c1_117, %c0_118] : memref<2x8xf32, #tpu.memory_space<vmem>>, vector<1x8xf32>
    %246 = vector.extract_strided_slice %205 {offsets = [8, 0], sizes = [8, 16], strides = [1, 1]} : vector<16x96xf32> to vector<8x16xf32>
    %247 = vector.extract_strided_slice %205 {offsets = [8, 32], sizes = [8, 16], strides = [1, 1]} : vector<16x96xf32> to vector<8x16xf32>
    %248 = vector.extract_strided_slice %205 {offsets = [8, 64], sizes = [8, 16], strides = [1, 1]} : vector<16x96xf32> to vector<8x16xf32>
    %cst_119 = arith.constant dense<0.000000e+00> : vector<8x8xf32>
    %249 = tpu.matmul %246, %247, %cst_119 {dimension_numbers = #tpu.dot_dimension_numbers<[1], [1], [0], [0], [0, 0, 1, 0], [], []>} : vector<8x16xf32>, vector<8x16xf32>, vector<8x8xf32> -> vector<8x8xf32>
    %cst_120 = arith.constant 2.500000e-01 : f32
    %250 = vector.broadcast %cst_120 : f32 to vector<8x8xf32>
    %251 = arith.mulf %249, %250 : vector<8x8xf32>
    %252 = vector.broadcast %245 : vector<1x8xf32> to vector<8x8xf32>
    %253 = arith.addf %251, %252 : vector<8x8xf32>
    %cst_121 = arith.constant dense<0xFF800000> : vector<8xf32>
    %254 = vector.multi_reduction <maximumf>, %253, %cst_121 [1] : vector<8x8xf32> to vector<8xf32>
    %255 = vector.shape_cast %254 : vector<8xf32> to vector<8x1xf32>
    %256 = vector.broadcast %255 : vector<8x1xf32> to vector<8x8xf32>
    %257 = arith.subf %253, %256 : vector<8x8xf32>
    %258 = math.exp %257 : vector<8x8xf32>
    %cst_122 = arith.constant dense<0.000000e+00> : vector<8xf32>
    %259 = vector.multi_reduction <add>, %258, %cst_122 [1] : vector<8x8xf32> to vector<8xf32>
    %260 = vector.shape_cast %259 : vector<8xf32> to vector<8x1xf32>
    %261 = vector.broadcast %260 : vector<8x1xf32> to vector<8x8xf32>
    %262 = arith.divf %258, %261 : vector<8x8xf32>
    %cst_123 = arith.constant dense<0.000000e+00> : vector<8x16xf32>
    %263 = tpu.matmul %262, %248, %cst_123 {dimension_numbers = #tpu.dot_dimension_numbers<[1], [0], [0], [1], [0, 0, 1, 1], [], []>} : vector<8x8xf32>, vector<8x16xf32>, vector<8x16xf32> -> vector<8x16xf32>
    %c8_124 = arith.constant 8 : index
    %c0_125 = arith.constant 0 : index
    %264 = vector.load %arg18[%c8_124, %c0_125] : memref<16x32xf32, #tpu.memory_space<vmem>>, vector<8x16xf32>
    tpu.vector_store %arg18[%c8_124, %c0_125], %263 {strides = array<i32>} : memref<16x32xf32, #tpu.memory_space<vmem>>, vector<8x16xf32>,
    %265 = vector.extract_strided_slice %205 {offsets = [8, 16], sizes = [8, 16], strides = [1, 1]} : vector<16x96xf32> to vector<8x16xf32>
    %266 = vector.extract_strided_slice %205 {offsets = [8, 48], sizes = [8, 16], strides = [1, 1]} : vector<16x96xf32> to vector<8x16xf32>
    %267 = vector.extract_strided_slice %205 {offsets = [8, 80], sizes = [8, 16], strides = [1, 1]} : vector<16x96xf32> to vector<8x16xf32>
    %cst_126 = arith.constant dense<0.000000e+00> : vector<8x8xf32>
    %268 = tpu.matmul %265, %266, %cst_126 {dimension_numbers = #tpu.dot_dimension_numbers<[1], [1], [0], [0], [0, 0, 1, 0], [], []>} : vector<8x16xf32>, vector<8x16xf32>, vector<8x8xf32> -> vector<8x8xf32>
    %cst_127 = arith.constant 2.500000e-01 : f32
    %269 = vector.broadcast %cst_127 : f32 to vector<8x8xf32>
    %270 = arith.mulf %268, %269 : vector<8x8xf32>
    %271 = vector.broadcast %245 : vector<1x8xf32> to vector<8x8xf32>
    %272 = arith.addf %270, %271 : vector<8x8xf32>
    %cst_128 = arith.constant dense<0xFF800000> : vector<8xf32>
    %273 = vector.multi_reduction <maximumf>, %272, %cst_128 [1] : vector<8x8xf32> to vector<8xf32>
    %274 = vector.shape_cast %273 : vector<8xf32> to vector<8x1xf32>
    %275 = vector.broadcast %274 : vector<8x1xf32> to vector<8x8xf32>
    %276 = arith.subf %272, %275 : vector<8x8xf32>
    %277 = math.exp %276 : vector<8x8xf32>
    %cst_129 = arith.constant dense<0.000000e+00> : vector<8xf32>
    %278 = vector.multi_reduction <add>, %277, %cst_129 [1] : vector<8x8xf32> to vector<8xf32>
    %279 = vector.shape_cast %278 : vector<8xf32> to vector<8x1xf32>
    %280 = vector.broadcast %279 : vector<8x1xf32> to vector<8x8xf32>
    %281 = arith.divf %277, %280 : vector<8x8xf32>
    %cst_130 = arith.constant dense<0.000000e+00> : vector<8x16xf32>
    %282 = tpu.matmul %281, %267, %cst_130 {dimension_numbers = #tpu.dot_dimension_numbers<[1], [0], [0], [1], [0, 0, 1, 1], [], []>} : vector<8x8xf32>, vector<8x16xf32>, vector<8x16xf32> -> vector<8x16xf32>
    %c8_131 = arith.constant 8 : index
    %c16_132 = arith.constant 16 : index
    %283 = vector.load %arg18[%c8_131, %c16_132] : memref<16x32xf32, #tpu.memory_space<vmem>>, vector<8x16xf32>
    tpu.vector_store %arg18[%c8_131, %c16_132], %282 {strides = array<i32>} : memref<16x32xf32, #tpu.memory_space<vmem>>, vector<8x16xf32>,
    %c0_133 = arith.constant 0 : index
    %c0_134 = arith.constant 0 : index
    %284 = vector.load %arg18[%c0_133, %c0_134] : memref<16x32xf32, #tpu.memory_space<vmem>>, vector<16x32xf32>
    %c1_135 = arith.constant 1 : index
    %c0_136 = arith.constant 0 : index
    %c0_137 = arith.constant 0 : index
    %285 = vector.load %arg7[%c1_135, %c0_136, %c0_137] : memref<2x32x32xf32, #tpu.memory_space<vmem>>, vector<1x32x32xf32>
    %286 = vector.shape_cast %285 : vector<1x32x32xf32> to vector<32x32xf32>
    %cst_138 = arith.constant dense<0.000000e+00> : vector<16x32xf32>
    %287 = tpu.matmul %284, %286, %cst_138 {dimension_numbers = #tpu.dot_dimension_numbers<[1], [0], [0], [1], [0, 0, 1, 1], [], []>} : vector<16x32xf32>, vector<32x32xf32>, vector<16x32xf32> -> vector<16x32xf32>
    %c1_139 = arith.constant 1 : index
    %c0_140 = arith.constant 0 : index
    %c0_141 = arith.constant 0 : index
    %288 = vector.load %arg8[%c1_139, %c0_140, %c0_141] : memref<2x1x32xf32, #tpu.memory_space<vmem>>, vector<1x1x32xf32>
    %289 = vector.shape_cast %288 : vector<1x1x32xf32> to vector<1x32xf32>
    %290 = vector.broadcast %289 : vector<1x32xf32> to vector<16x32xf32>
    %291 = arith.addf %287, %290 : vector<16x32xf32>
    %292 = arith.addf %291, %198 : vector<16x32xf32>
    %c1_142 = arith.constant 1 : index
    %c0_143 = arith.constant 0 : index
    %c0_144 = arith.constant 0 : index
    %293 = vector.load %arg9[%c1_142, %c0_143, %c0_144] : memref<2x1x32xf32, #tpu.memory_space<vmem>>, vector<1x1x32xf32>
    %294 = vector.shape_cast %293 : vector<1x1x32xf32> to vector<1x32xf32>
    %c1_145 = arith.constant 1 : index
    %c0_146 = arith.constant 0 : index
    %c0_147 = arith.constant 0 : index
    %295 = vector.load %arg10[%c1_145, %c0_146, %c0_147] : memref<2x1x32xf32, #tpu.memory_space<vmem>>, vector<1x1x32xf32>
    %296 = vector.shape_cast %295 : vector<1x1x32xf32> to vector<1x32xf32>
    %cst_148 = arith.constant dense<0.000000e+00> : vector<16xf32>
    %297 = vector.multi_reduction <add>, %292, %cst_148 [1] : vector<16x32xf32> to vector<16xf32>
    %298 = vector.shape_cast %297 : vector<16xf32> to vector<16x1xf32>
    %cst_149 = arith.constant 3.200000e+01 : f32
    %299 = vector.broadcast %cst_149 : f32 to vector<16x1xf32>
    %300 = arith.divf %298, %299 : vector<16x1xf32>
    %301 = vector.broadcast %300 : vector<16x1xf32> to vector<16x32xf32>
    %302 = arith.subf %292, %301 : vector<16x32xf32>
    %303 = arith.mulf %302, %302 : vector<16x32xf32>
    %cst_150 = arith.constant dense<0.000000e+00> : vector<16xf32>
    %304 = vector.multi_reduction <add>, %303, %cst_150 [1] : vector<16x32xf32> to vector<16xf32>
    %305 = vector.shape_cast %304 : vector<16xf32> to vector<16x1xf32>
    %cst_151 = arith.constant 3.200000e+01 : f32
    %306 = vector.broadcast %cst_151 : f32 to vector<16x1xf32>
    %307 = arith.divf %305, %306 : vector<16x1xf32>
    %308 = vector.broadcast %300 : vector<16x1xf32> to vector<16x32xf32>
    %309 = arith.subf %292, %308 : vector<16x32xf32>
    %cst_152 = arith.constant 9.99999996E-13 : f32
    %310 = vector.broadcast %cst_152 : f32 to vector<16x1xf32>
    %311 = arith.addf %307, %310 : vector<16x1xf32>
    %312 = math.rsqrt %311 : vector<16x1xf32>
    %313 = vector.broadcast %312 : vector<16x1xf32> to vector<16x32xf32>
    %314 = arith.mulf %309, %313 : vector<16x32xf32>
    %315 = vector.broadcast %294 : vector<1x32xf32> to vector<16x32xf32>
    %316 = arith.mulf %314, %315 : vector<16x32xf32>
    %317 = vector.broadcast %296 : vector<1x32xf32> to vector<16x32xf32>
    %318 = arith.addf %316, %317 : vector<16x32xf32>
    %c1_153 = arith.constant 1 : index
    %c0_154 = arith.constant 0 : index
    %c0_155 = arith.constant 0 : index
    %319 = vector.load %arg11[%c1_153, %c0_154, %c0_155] : memref<2x32x64xf32, #tpu.memory_space<vmem>>, vector<1x32x64xf32>
    %320 = vector.shape_cast %319 : vector<1x32x64xf32> to vector<32x64xf32>
    %cst_156 = arith.constant dense<0.000000e+00> : vector<16x64xf32>
    %321 = tpu.matmul %318, %320, %cst_156 {dimension_numbers = #tpu.dot_dimension_numbers<[1], [0], [0], [1], [0, 0, 1, 1], [], []>} : vector<16x32xf32>, vector<32x64xf32>, vector<16x64xf32> -> vector<16x64xf32>
    %c1_157 = arith.constant 1 : index
    %c0_158 = arith.constant 0 : index
    %c0_159 = arith.constant 0 : index
    %322 = vector.load %arg12[%c1_157, %c0_158, %c0_159] : memref<2x1x64xf32, #tpu.memory_space<vmem>>, vector<1x1x64xf32>
    %323 = vector.shape_cast %322 : vector<1x1x64xf32> to vector<1x64xf32>
    %324 = vector.broadcast %323 : vector<1x64xf32> to vector<16x64xf32>
    %325 = arith.addf %321, %324 : vector<16x64xf32>
    %cst_160 = arith.constant 5.000000e-01 : f32
    %326 = vector.broadcast %cst_160 : f32 to vector<16x64xf32>
    %327 = arith.mulf %326, %325 : vector<16x64xf32>
    %cst_161 = arith.constant 4.471500e-02 : f32
    %328 = vector.broadcast %cst_161 : f32 to vector<16x64xf32>
    %329 = arith.mulf %328, %325 : vector<16x64xf32>
    %330 = arith.mulf %329, %325 : vector<16x64xf32>
    %331 = arith.mulf %330, %325 : vector<16x64xf32>
    %332 = arith.addf %325, %331 : vector<16x64xf32>
    %cst_162 = arith.constant 0.797884583 : f32
    %333 = vector.broadcast %cst_162 : f32 to vector<16x64xf32>
    %334 = arith.mulf %333, %332 : vector<16x64xf32>
    %335 = math.tanh %334 : vector<16x64xf32>
    %cst_163 = arith.constant 1.000000e+00 : f32
    %336 = vector.broadcast %cst_163 : f32 to vector<16x64xf32>
    %337 = arith.addf %336, %335 : vector<16x64xf32>
    %338 = arith.mulf %327, %337 : vector<16x64xf32>
    %c1_164 = arith.constant 1 : index
    %c0_165 = arith.constant 0 : index
    %c0_166 = arith.constant 0 : index
    %339 = vector.load %arg13[%c1_164, %c0_165, %c0_166] : memref<2x64x32xf32, #tpu.memory_space<vmem>>, vector<1x64x32xf32>
    %340 = vector.shape_cast %339 : vector<1x64x32xf32> to vector<64x32xf32>
    %cst_167 = arith.constant dense<0.000000e+00> : vector<16x32xf32>
    %341 = tpu.matmul %338, %340, %cst_167 {dimension_numbers = #tpu.dot_dimension_numbers<[1], [0], [0], [1], [0, 0, 1, 1], [], []>} : vector<16x64xf32>, vector<64x32xf32>, vector<16x32xf32> -> vector<16x32xf32>
    %c1_168 = arith.constant 1 : index
    %c0_169 = arith.constant 0 : index
    %c0_170 = arith.constant 0 : index
    %342 = vector.load %arg14[%c1_168, %c0_169, %c0_170] : memref<2x1x32xf32, #tpu.memory_space<vmem>>, vector<1x1x32xf32>
    %343 = vector.shape_cast %342 : vector<1x1x32xf32> to vector<1x32xf32>
    %344 = vector.broadcast %343 : vector<1x32xf32> to vector<16x32xf32>
    %345 = arith.addf %341, %344 : vector<16x32xf32>
    %346 = arith.addf %345, %318 : vector<16x32xf32>
    %c1_171 = arith.constant 1 : index
    %c0_172 = arith.constant 0 : index
    %c0_173 = arith.constant 0 : index
    %347 = vector.load %arg15[%c1_171, %c0_172, %c0_173] : memref<2x1x32xf32, #tpu.memory_space<vmem>>, vector<1x1x32xf32>
    %348 = vector.shape_cast %347 : vector<1x1x32xf32> to vector<1x32xf32>
    %c1_174 = arith.constant 1 : index
    %c0_175 = arith.constant 0 : index
    %c0_176 = arith.constant 0 : index
    %349 = vector.load %arg16[%c1_174, %c0_175, %c0_176] : memref<2x1x32xf32, #tpu.memory_space<vmem>>, vector<1x1x32xf32>
    %350 = vector.shape_cast %349 : vector<1x1x32xf32> to vector<1x32xf32>
    %cst_177 = arith.constant dense<0.000000e+00> : vector<16xf32>
    %351 = vector.multi_reduction <add>, %346, %cst_177 [1] : vector<16x32xf32> to vector<16xf32>
    %352 = vector.shape_cast %351 : vector<16xf32> to vector<16x1xf32>
    %cst_178 = arith.constant 3.200000e+01 : f32
    %353 = vector.broadcast %cst_178 : f32 to vector<16x1xf32>
    %354 = arith.divf %352, %353 : vector<16x1xf32>
    %355 = vector.broadcast %354 : vector<16x1xf32> to vector<16x32xf32>
    %356 = arith.subf %346, %355 : vector<16x32xf32>
    %357 = arith.mulf %356, %356 : vector<16x32xf32>
    %cst_179 = arith.constant dense<0.000000e+00> : vector<16xf32>
    %358 = vector.multi_reduction <add>, %357, %cst_179 [1] : vector<16x32xf32> to vector<16xf32>
    %359 = vector.shape_cast %358 : vector<16xf32> to vector<16x1xf32>
    %cst_180 = arith.constant 3.200000e+01 : f32
    %360 = vector.broadcast %cst_180 : f32 to vector<16x1xf32>
    %361 = arith.divf %359, %360 : vector<16x1xf32>
    %362 = vector.broadcast %354 : vector<16x1xf32> to vector<16x32xf32>
    %363 = arith.subf %346, %362 : vector<16x32xf32>
    %cst_181 = arith.constant 9.99999996E-13 : f32
    %364 = vector.broadcast %cst_181 : f32 to vector<16x1xf32>
    %365 = arith.addf %361, %364 : vector<16x1xf32>
    %366 = math.rsqrt %365 : vector<16x1xf32>
    %367 = vector.broadcast %366 : vector<16x1xf32> to vector<16x32xf32>
    %368 = arith.mulf %363, %367 : vector<16x32xf32>
    %369 = vector.broadcast %348 : vector<1x32xf32> to vector<16x32xf32>
    %370 = arith.mulf %368, %369 : vector<16x32xf32>
    %371 = vector.broadcast %350 : vector<1x32xf32> to vector<16x32xf32>
    %372 = arith.addf %370, %371 : vector<16x32xf32>
    %c0_182 = arith.constant 0 : index
    %c0_183 = arith.constant 0 : index
    %373 = vector.load %arg17[%c0_182, %c0_183] : memref<16x32xf32, #tpu.memory_space<vmem>>, vector<16x32xf32>
    tpu.vector_store %arg17[%c0_182, %c0_183], %372 {strides = array<i32>} : memref<16x32xf32, #tpu.memory_space<vmem>>, vector<16x32xf32>,
    return
  }
  func.func @transform_0(%arg0: i32) -> (i32, i32) {
    %c0_i32 = arith.constant 0 : i32
    %c0_i32_0 = arith.constant 0 : i32
    %c0_i32_1 = arith.constant 0 : i32
    return %c0_i32, %c0_i32_0 : i32, i32
  }
  func.func @transform_1(%arg0: i32) -> (i32, i32) {
    %c0_i32 = arith.constant 0 : i32
    %c0_i32_0 = arith.constant 0 : i32
    %c0_i32_1 = arith.constant 0 : i32
    return %c0_i32, %c0_i32_0 : i32, i32
  }
  func.func @transform_2(%arg0: i32) -> (i32, i32) {
    %c0_i32 = arith.constant 0 : i32
    %c0_i32_0 = arith.constant 0 : i32
    %c0_i32_1 = arith.constant 0 : i32
    return %c0_i32, %c0_i32_0 : i32, i32
  }
  func.func @transform_3(%arg0: i32) -> (i32, i32) {
    %c0_i32 = arith.constant 0 : i32
    %c0_i32_0 = arith.constant 0 : i32
    %c0_i32_1 = arith.constant 0 : i32
    return %c0_i32, %c0_i32_0 : i32, i32
  }
  func.func @transform_4(%arg0: i32) -> (i32, i32, i32) {
    %c0_i32 = arith.constant 0 : i32
    %c0_i32_0 = arith.constant 0 : i32
    %c0_i32_1 = arith.constant 0 : i32
    %c0_i32_2 = arith.constant 0 : i32
    return %c0_i32, %c0_i32_0, %c0_i32_1 : i32, i32, i32
  }
  func.func @transform_5(%arg0: i32) -> (i32, i32, i32) {
    %c0_i32 = arith.constant 0 : i32
    %c0_i32_0 = arith.constant 0 : i32
    %c0_i32_1 = arith.constant 0 : i32
    %c0_i32_2 = arith.constant 0 : i32
    return %c0_i32, %c0_i32_0, %c0_i32_1 : i32, i32, i32
  }
  func.func @transform_6(%arg0: i32) -> (i32, i32, i32) {
    %c0_i32 = arith.constant 0 : i32
    %c0_i32_0 = arith.constant 0 : i32
    %c0_i32_1 = arith.constant 0 : i32
    %c0_i32_2 = arith.constant 0 : i32
    return %c0_i32, %c0_i32_0, %c0_i32_1 : i32, i32, i32
  }
  func.func @transform_7(%arg0: i32) -> (i32, i32, i32) {
    %c0_i32 = arith.constant 0 : i32
    %c0_i32_0 = arith.constant 0 : i32
    %c0_i32_1 = arith.constant 0 : i32
    %c0_i32_2 = arith.constant 0 : i32
    return %c0_i32, %c0_i32_0, %c0_i32_1 : i32, i32, i32
  }
  func.func @transform_8(%arg0: i32) -> (i32, i32, i32) {
    %c0_i32 = arith.constant 0 : i32
    %c0_i32_0 = arith.constant 0 : i32
    %c0_i32_1 = arith.constant 0 : i32
    %c0_i32_2 = arith.constant 0 : i32
    return %c0_i32, %c0_i32_0, %c0_i32_1 : i32, i32, i32
  }
  func.func @transform_9(%arg0: i32) -> (i32, i32, i32) {
    %c0_i32 = arith.constant 0 : i32
    %c0_i32_0 = arith.constant 0 : i32
    %c0_i32_1 = arith.constant 0 : i32
    %c0_i32_2 = arith.constant 0 : i32
    return %c0_i32, %c0_i32_0, %c0_i32_1 : i32, i32, i32
  }
  func.func @transform_10(%arg0: i32) -> (i32, i32, i32) {
    %c0_i32 = arith.constant 0 : i32
    %c0_i32_0 = arith.constant 0 : i32
    %c0_i32_1 = arith.constant 0 : i32
    %c0_i32_2 = arith.constant 0 : i32
    return %c0_i32, %c0_i32_0, %c0_i32_1 : i32, i32, i32
  }
  func.func @transform_11(%arg0: i32) -> (i32, i32, i32) {
    %c0_i32 = arith.constant 0 : i32
    %c0_i32_0 = arith.constant 0 : i32
    %c0_i32_1 = arith.constant 0 : i32
    %c0_i32_2 = arith.constant 0 : i32
    return %c0_i32, %c0_i32_0, %c0_i32_1 : i32, i32, i32
  }
  func.func @transform_12(%arg0: i32) -> (i32, i32, i32) {
    %c0_i32 = arith.constant 0 : i32
    %c0_i32_0 = arith.constant 0 : i32
    %c0_i32_1 = arith.constant 0 : i32
    %c0_i32_2 = arith.constant 0 : i32
    return %c0_i32, %c0_i32_0, %c0_i32_1 : i32, i32, i32
  }
  func.func @transform_13(%arg0: i32) -> (i32, i32, i32) {
    %c0_i32 = arith.constant 0 : i32
    %c0_i32_0 = arith.constant 0 : i32
    %c0_i32_1 = arith.constant 0 : i32
    %c0_i32_2 = arith.constant 0 : i32
    return %c0_i32, %c0_i32_0, %c0_i32_1 : i32, i32, i32
  }
  func.func @transform_14(%arg0: i32) -> (i32, i32, i32) {
    %c0_i32 = arith.constant 0 : i32
    %c0_i32_0 = arith.constant 0 : i32
    %c0_i32_1 = arith.constant 0 : i32
    %c0_i32_2 = arith.constant 0 : i32
    return %c0_i32, %c0_i32_0, %c0_i32_1 : i32, i32, i32
  }
  func.func @transform_15(%arg0: i32) -> (i32, i32, i32) {
    %c0_i32 = arith.constant 0 : i32
    %c0_i32_0 = arith.constant 0 : i32
    %c0_i32_1 = arith.constant 0 : i32
    %c0_i32_2 = arith.constant 0 : i32
    return %c0_i32, %c0_i32_0, %c0_i32_1 : i32, i32, i32
  }
  func.func @transform_16(%arg0: i32) -> (i32, i32) {
    %c0_i32 = arith.constant 0 : i32
    %c0_i32_0 = arith.constant 0 : i32
    %c0_i32_1 = arith.constant 0 : i32
    return %c0_i32, %c0_i32_0 : i32, i32
  }
}

</mosaic_0001>

<llo_original>
// kernel: tpu_custom_call.1
$region0: #{tpu_custom_call.1}
  #allocation0 [shape = 'u32[]', space=smem, size = 0x4, offset = 0x4, fixed_abs, tag = 'smem constant byte address 0x4 - core index']
  #allocation1 [shape = 'u32[72,128]{1,0:T(1,128)}', space=vmem, size = 0x9000, scoped, tag = 'internal scratch']
  #allocation2 [shape = 'f32[16,32]{1,0:T(8,128)}', space=vmem, size = 0x2000, scoped, tag = 'scratch operand']
  %s0 = inlined_call_operand.hbm [shape: f32[16,32], index: 0, kind: input, shape index: {}]
  %s1 = inlined_call_operand.hbm [shape: f32[2,8], index: 1, kind: input, shape index: {}]
  %s2 = inlined_call_operand.hbm [shape: f32[1,32], index: 2, kind: input, shape index: {}]
  %s3 = inlined_call_operand.hbm [shape: f32[1,32], index: 3, kind: input, shape index: {}]
  %s4 = inlined_call_operand.vmem [shape: f32[2,32,96], index: 4, kind: input, shape index: {}]
  %s5 = inlined_call_operand.vmem [shape: f32[2,1,96], index: 5, kind: input, shape index: {}]
  %s6 = inlined_call_operand.vmem [shape: f32[2,32,32], index: 6, kind: input, shape index: {}]
  %s7 = inlined_call_operand.vmem [shape: f32[2,1,32], index: 7, kind: input, shape index: {}]
  %s8 = inlined_call_operand.hbm [shape: f32[2,1,32], index: 8, kind: input, shape index: {}]
  %s9 = inlined_call_operand.vmem [shape: f32[2,1,32], index: 9, kind: input, shape index: {}]
  %s10 = inlined_call_operand.vmem [shape: f32[2,32,64], index: 10, kind: input, shape index: {}]
  %s11 = inlined_call_operand.vmem [shape: f32[2,1,64], index: 11, kind: input, shape index: {}]
  %s12 = inlined_call_operand.vmem [shape: f32[2,64,32], index: 12, kind: input, shape index: {}]
  %s13 = inlined_call_operand.vmem [shape: f32[2,1,32], index: 13, kind: input, shape index: {}]
  %s14 = inlined_call_operand.hbm [shape: f32[2,1,32], index: 14, kind: input, shape index: {}]
  %s15 = inlined_call_operand.vmem [shape: f32[2,1,32], index: 15, kind: input, shape index: {}]
  %s16 = inlined_call_operand.hbm [shape: f32[16,32], index: 16, kind: output, shape index: {}]
  %s17 = sld [smem:[#allocation0]]
  $region98: #{tpu_custom_call.1} parent=0
    _
  %s19 = ssub.s32 1, %s17
  %s20 = scalar_select 0, %s19, %s17
  $region1: #{tpu_custom_call.1} parent=0
    #allocation3 [shape = 'u8[8192]{0}', space=vmem, size = 0x2000, scoped, tag = 'input window, operand 0, single buffered']
    #allocation4 [shape = 's32[1]{0}', space=sflag, size = 0x4, scoped, tag = 'scoped memory for tpu_custom_call.1']
    #allocation5 [shape = 's32[1]{0}', space=sflag, size = 0x4, scoped, tag = 'scoped memory for tpu_custom_call.1']
    #allocation6 [shape = 'u8[1024]{0}', space=vmem, size = 0x400, scoped, tag = 'input window, operand 1, single buffered']
    #allocation7 [shape = 's32[1]{0}', space=sflag, size = 0x4, scoped, tag = 'scoped memory for tpu_custom_call.1']
    #allocation8 [shape = 'u8[512]{0}', space=vmem, size = 0x400, scoped, tag = 'input window, operand 2, single buffered']
    #allocation9 [shape = 'u8[512]{0}', space=vmem, size = 0x400, scoped, tag = 'input window, operand 3, single buffered']
    #allocation10 [shape = 's32[1]{0}', space=sflag, size = 0x4, scoped, tag = 'scoped memory for tpu_custom_call.1']
    #allocation11 [shape = 'u8[1024]{0}', space=vmem, size = 0x400, scoped, tag = 'input window, operand 8, single buffered']
    #allocation12 [shape = 'u8[1024]{0}', space=vmem, size = 0x400, scoped, tag = 'input window, operand 14, single buffered']
    #allocation13 [shape = 's32[1]{0}', space=sflag, size = 0x4, scoped, tag = 'scoped memory for tpu_custom_call.1']
    #allocation14 [shape = 'u8[8192]{0}', space=vmem, size = 0x2000, scoped, tag = 'output window, operand 0, single buffered']
    %21 = vsyncpa [#allocation4], 0
    %22 = vsyncpa [#allocation7], 0
    %23 = vsyncpa [#allocation10], 0
    %24 = vsyncpa [#allocation13], 0
    %25 = vsyncpa [#allocation5], 0
    // Predicated region
    $region2: #{tpu_custom_call.1} parent=1 // pred_check
      _
    $region3: #{tpu_custom_call.1} parent=1 // pred_check_branch
      %27 = sbr.rel (0) target = $region5
    $region4: #{tpu_custom_call.1} parent=1 // pred_region
      %29 = vsyncadd [#allocation4], 0
      %s30 = sshll.u32 %s0, 4
      %s31 = int_to_ptr.hbm [resolvable:$true] %s30
      %s32 = sshll.u32 [#allocation3], 4
      %s33 = int_to_ptr.vmem [resolvable:$true] %s32
      %38 = dma.hbm_to_vmem [thread:$0]  %s31, 256, %s33, [#allocation4], 128, 128, 8
    $region5: #{tpu_custom_call.1} parent=1 // pred_fallthru
      _
    // Predicated region
    $region6: #{tpu_custom_call.1} parent=1 // pred_check
      _
    $region7: #{tpu_custom_call.1} parent=1 // pred_check_branch
      %40 = sbr.rel (0) target = $region9
    $region8: #{tpu_custom_call.1} parent=1 // pred_region
      %42 = vsyncadd [#allocation7], 0
      %s44 = sshll.u32 %s1, 4
      %s45 = int_to_ptr.hbm [resolvable:$true] %s44
      %s46 = sshll.u32 [#allocation6], 4
      %s47 = int_to_ptr.vmem [resolvable:$true] %s46
      %49 = dma.hbm_to_vmem [thread:$0]  %s45, 32, %s47, [#allocation7]
    $region9: #{tpu_custom_call.1} parent=1 // pred_fallthru
      _
    // Predicated region
    $region10: #{tpu_custom_call.1} parent=1 // pred_check
      _
    $region11: #{tpu_custom_call.1} parent=1 // pred_check_branch
      %51 = sbr.rel (0) target = $region13
    $region12: #{tpu_custom_call.1} parent=1 // pred_region
      %53 = vsyncadd [#allocation7], 0
      %s55 = sshll.u32 %s2, 4
      %s56 = int_to_ptr.hbm [resolvable:$true] %s55
      %s57 = sshll.u32 [#allocation8], 4
      %s58 = int_to_ptr.vmem [resolvable:$true] %s57
      %60 = dma.hbm_to_vmem [thread:$0]  %s56, 16, %s58, [#allocation7]
    $region13: #{tpu_custom_call.1} parent=1 // pred_fallthru
      _
    // Predicated region
    $region14: #{tpu_custom_call.1} parent=1 // pred_check
      _
    $region15: #{tpu_custom_call.1} parent=1 // pred_check_branch
      %62 = sbr.rel (0) target = $region17
    $region16: #{tpu_custom_call.1} parent=1 // pred_region
      %64 = vsyncadd [#allocation10], 0
      %s66 = sshll.u32 %s3, 4
      %s67 = int_to_ptr.hbm [resolvable:$true] %s66
      %s68 = sshll.u32 [#allocation9], 4
      %s69 = int_to_ptr.vmem [resolvable:$true] %s68
      %71 = dma.hbm_to_vmem [thread:$0]  %s67, 16, %s69, [#allocation10]
    $region17: #{tpu_custom_call.1} parent=1 // pred_fallthru
      _
    // Predicated region
    $region18: #{tpu_custom_call.1} parent=1 // pred_check
      _
    $region19: #{tpu_custom_call.1} parent=1 // pred_check_branch
      %73 = sbr.rel (0) target = $region21
    $region20: #{tpu_custom_call.1} parent=1 // pred_region
      _
    $region21: #{tpu_custom_call.1} parent=1 // pred_fallthru
      _
    // Predicated region
    $region22: #{tpu_custom_call.1} parent=1 // pred_check
      _
    $region23: #{tpu_custom_call.1} parent=1 // pred_check_branch
      %75 = sbr.rel (0) target = $region25
    $region24: #{tpu_custom_call.1} parent=1 // pred_region
      _
    $region25: #{tpu_custom_call.1} parent=1 // pred_fallthru
      _
    // Predicated region
    $region26: #{tpu_custom_call.1} parent=1 // pred_check
      _
    $region27: #{tpu_custom_call.1} parent=1 // pred_check_branch
      %77 = sbr.rel (0) target = $region29
    $region28: #{tpu_custom_call.1} parent=1 // pred_region
      _
    $region29: #{tpu_custom_call.1} parent=1 // pred_fallthru
      _
    // Predicated region
    $region30: #{tpu_custom_call.1} parent=1 // pred_check
      _
    $region31: #{tpu_custom_call.1} parent=1 // pred_check_branch
      %79 = sbr.rel (0) target = $region33
    $region32: #{tpu_custom_call.1} parent=1 // pred_region
      _
    $region33: #{tpu_custom_call.1} parent=1 // pred_fallthru
      _
    // Predicated region
    $region34: #{tpu_custom_call.1} parent=1 // pred_check
      _
    $region35: #{tpu_custom_call.1} parent=1 // pred_check_branch
      %81 = sbr.rel (0) target = $region37
    $region36: #{tpu_custom_call.1} parent=1 // pred_region
      %83 = vsyncadd [#allocation10], 0
      %s84 = sshll.u32 %s8, 4
      %s85 = int_to_ptr.hbm [resolvable:$true] %s84
      %s86 = sshll.u32 [#allocation11], 4
      %s87 = int_to_ptr.vmem [resolvable:$true] %s86
      %92 = dma.hbm_to_vmem [thread:$0]  %s85, 32, %s87, [#allocation10], 16, 16, 1
    $region37: #{tpu_custom_call.1} parent=1 // pred_fallthru
      _
    // Predicated region
    $region38: #{tpu_custom_call.1} parent=1 // pred_check
      _
    $region39: #{tpu_custom_call.1} parent=1 // pred_check_branch
      %94 = sbr.rel (0) target = $region41
    $region40: #{tpu_custom_call.1} parent=1 // pred_region
      _
    $region41: #{tpu_custom_call.1} parent=1 // pred_fallthru
      _
    // Predicated region
    $region42: #{tpu_custom_call.1} parent=1 // pred_check
      _
    $region43: #{tpu_custom_call.1} parent=1 // pred_check_branch
      %96 = sbr.rel (0) target = $region45
    $region44: #{tpu_custom_call.1} parent=1 // pred_region
      _
    $region45: #{tpu_custom_call.1} parent=1 // pred_fallthru
      _
    // Predicated region
    $region46: #{tpu_custom_call.1} parent=1 // pred_check
      _
    $region47: #{tpu_custom_call.1} parent=1 // pred_check_branch
      %98 = sbr.rel (0) target = $region49
    $region48: #{tpu_custom_call.1} parent=1 // pred_region
      _
    $region49: #{tpu_custom_call.1} parent=1 // pred_fallthru
      _
    // Predicated region
    $region50: #{tpu_custom_call.1} parent=1 // pred_check
      _
    $region51: #{tpu_custom_call.1} parent=1 // pred_check_branch
      %100 = sbr.rel (0) target = $region53
    $region52: #{tpu_custom_call.1} parent=1 // pred_region
      _
    $region53: #{tpu_custom_call.1} parent=1 // pred_fallthru
      _
    // Predicated region
    $region54: #{tpu_custom_call.1} parent=1 // pred_check
      _
    $region55: #{tpu_custom_call.1} parent=1 // pred_check_branch
      %102 = sbr.rel (0) target = $region57
    $region56: #{tpu_custom_call.1} parent=1 // pred_region
      _
    $region57: #{tpu_custom_call.1} parent=1 // pred_fallthru
      _
    // Predicated region
    $region58: #{tpu_custom_call.1} parent=1 // pred_check
      _
    $region59: #{tpu_custom_call.1} parent=1 // pred_check_branch
      %104 = sbr.rel (0) target = $region61
    $region60: #{tpu_custom_call.1} parent=1 // pred_region
      %106 = vsyncadd [#allocation13], 0
      %s107 = sshll.u32 %s14, 4
      %s108 = int_to_ptr.hbm [resolvable:$true] %s107
      %s109 = sshll.u32 [#allocation12], 4
      %s110 = int_to_ptr.vmem [resolvable:$true] %s109
      %115 = dma.hbm_to_vmem [thread:$0]  %s108, 32, %s110, [#allocation13], 16, 16, 1
    $region61: #{tpu_custom_call.1} parent=1 // pred_fallthru
      _
    // Predicated region
    $region62: #{tpu_custom_call.1} parent=1 // pred_check
      _
    $region63: #{tpu_custom_call.1} parent=1 // pred_check_branch
      %117 = sbr.rel (0) target = $region65
    $region64: #{tpu_custom_call.1} parent=1 // pred_region
      _
    $region65: #{tpu_custom_call.1} parent=1 // pred_fallthru
      _
    // Predicated region
    $region66: #{tpu_custom_call.1} parent=1 // pred_check
      _
    $region67: #{tpu_custom_call.1} parent=1 // pred_check_branch
      %119 = sbr.rel (0) target = $region69
    $region68: #{tpu_custom_call.1} parent=1 // pred_region
      %121 = dma.done [#allocation4], 256
    $region69: #{tpu_custom_call.1} parent=1 // pred_fallthru
      _
    // Predicated region
    $region70: #{tpu_custom_call.1} parent=1 // pred_check
      _
    $region71: #{tpu_custom_call.1} parent=1 // pred_check_branch
      %123 = sbr.rel (0) target = $region73
    $region72: #{tpu_custom_call.1} parent=1 // pred_region
      %125 = dma.done [#allocation7], 32
    $region73: #{tpu_custom_call.1} parent=1 // pred_fallthru
      _
    // Predicated region
    $region74: #{tpu_custom_call.1} parent=1 // pred_check
      _
    $region75: #{tpu_custom_call.1} parent=1 // pred_check_branch
      %127 = sbr.rel (0) target = $region77
    $region76: #{tpu_custom_call.1} parent=1 // pred_region
      %129 = dma.done [#allocation7], 16
    $region77: #{tpu_custom_call.1} parent=1 // pred_fallthru
      _
    // Predicated region
    $region78: #{tpu_custom_call.1} parent=1 // pred_check
      _
    $region79: #{tpu_custom_call.1} parent=1 // pred_check_branch
      %131 = sbr.rel (0) target = $region81
    $region80: #{tpu_custom_call.1} parent=1 // pred_region
      %133 = dma.done [#allocation10], 16
    $region81: #{tpu_custom_call.1} parent=1 // pred_fallthru
      _
    // Predicated region
    $region82: #{tpu_custom_call.1} parent=1 // pred_check
      _
    $region83: #{tpu_custom_call.1} parent=1 // pred_check_branch
      %135 = sbr.rel (0) target = $region85
    $region84: #{tpu_custom_call.1} parent=1 // pred_region
      %137 = dma.done [#allocation10], 32
    $region85: #{tpu_custom_call.1} parent=1 // pred_fallthru
      _
    // Predicated region
    $region86: #{tpu_custom_call.1} parent=1 // pred_check
      _
    $region87: #{tpu_custom_call.1} parent=1 // pred_check_branch
      %139 = sbr.rel (0) target = $region89
    $region88: #{tpu_custom_call.1} parent=1 // pred_region
      %141 = dma.done [#allocation13], 32
    $region89: #{tpu_custom_call.1} parent=1 // pred_fallthru
      _
    %v142 = vld [vmem:[#allocation3] sm:$0xff]
    %v143 = vld [vmem:[#allocation3 + $0x8] sm:$0xff]
    %v144 = vld [vmem:[#allocation8] sm:$0x1]
    %v145 = vld [vmem:[#allocation9] sm:$0x1]
    %vm146 = vcmask 261120
    %v147 = vsel %vm146, %v142, 0.0
    %148 = vadd.xlane.f32.xlu0 %v147
    %v149 = vpop.xlane.xlu0 %148
    %v150 = vsel %vm146, %v143, 0.0
    %151 = vadd.xlane.f32.xlu0 %v150
    %v152 = vpop.xlane.xlu0 %151
    %v153 = vrcp.pop 32.0
    %v154 = vmul.f32 32.0, %v153
    %v155 = vsub.f32 1.0, %v154
    %v156 = vmul.f32 %v153, %v155
    %v157 = vadd.f32 %v153, %v156
    %vm158 = vweird.f32 %v153
    %v159 = vsel %vm158, %v153, %v157
    %v160 = vmul.f32 %v149, %v159
    %v161 = vmul.f32 %v152, %v159
    %v162 = vsub.f32 %v142, %v160
    %v163 = vsub.f32 %v143, %v161
    %v164 = vmul.f32 %v162, %v162
    %v165 = vmul.f32 %v163, %v163
    %v166 = vsel %vm146, %v164, 0.0
    %167 = vadd.xlane.f32.xlu0 %v166
    %v168 = vpop.xlane.xlu0 %167
    %v169 = vsel %vm146, %v165, 0.0
    %170 = vadd.xlane.f32.xlu0 %v169
    %v171 = vpop.xlane.xlu0 %170
    %v172 = vmul.f32 %v168, %v159
    %v173 = vmul.f32 %v171, %v159
    %v174 = vadd.f32 %v172, 1e-12
    %v175 = vadd.f32 %v173, 1e-12
    %v176 = vrsqrt.pop %v174
    %v177 = vmul.f32 %v176, %v174
    %v178 = vmul.f32 %v177, %v176
    %v179 = vmul.f32 0.5, %v178
    %v180 = vsub.f32 1.5, %v179
    %v181 = vmul.f32 %v176, %v180
    %vm182 = vweird.f32 %v174
    %vm183 = vweird.f32 %v176
    %vm184 = vmor %vm182, %vm183
    %v185 = vsel %vm184, %v176, %v181
    %v186 = vrsqrt.pop %v175
    %v187 = vmul.f32 %v186, %v175
    %v188 = vmul.f32 %v187, %v186
    %v189 = vmul.f32 0.5, %v188
    %v190 = vsub.f32 1.5, %v189
    %v191 = vmul.f32 %v186, %v190
    %vm192 = vweird.f32 %v175
    %vm193 = vweird.f32 %v186
    %vm194 = vmor %vm192, %vm193
    %v195 = vsel %vm194, %v186, %v191
    %v196 = vmul.f32 %v162, %v185
    %v197 = vmul.f32 %v163, %v195
    %v199 = vperm.slane %v144, 0
    %v201 = vmul.f32 %v196, %v199
    %v202 = vmul.f32 %v197, %v199
    %v204 = vperm.slane %v145, 0
    %v206 = vadd.f32 %v201, %v204
    %v207 = vadd.f32 %v202, %v204
    %v208 = vld [vmem:[%s4] sm:$0xff]
    %v209 = vld [vmem:[%s4 + $0x8] sm:$0xff]
    %v210 = vld [vmem:[%s4 + $0x10] sm:$0xff]
    %v211 = vld [vmem:[%s4 + $0x18] sm:$0xff]
    %v212 = vld [vmem:[%s5] sm:$0x1]
    %v214 = vperm.slane %v212, 0
    %v217 = vsel %vm146, %v206, 0
    %v220 = vsel %vm146, %v207, 0
    %222 = vmatpush.msra.mxu0 0.0
    %223 = vmatpush.msra.mxu0 0.0
    %224 = vmatpush.msra.mxu0 0.0
    %225 = vmatpush.msra.mxu0 0.0
    %226 = vmatpush.msra.mxu0 0.0
    %227 = vmatpush.msra.mxu0 0.0
    %228 = vmatpush.msra.mxu0 0.0
    %229 = vmatpush.msra.mxu0 0.0
    %230 = vmatpush.msra.mxu0 0.0
    %231 = vmatpush.msra.mxu0 0.0
    %232 = vmatpush.msra.mxu0 0.0
    %233 = vmatpush.msra.mxu0 0.0
    %234 = vmatpush.msra.mxu0 %v211
    %235 = vmatpush.msra.mxu0 %v210
    %236 = vmatpush.msra.mxu0 %v209
    %237 = vmatpush.msra.mxu0 %v208
    %238 = vmatmul.f32.gmra.mxu0 %v217
    %v239 = vpop.f32.mrf.mxu0
    %v240 = vadd.f32 %v214, %v239
    %241 = vmatmul.f32.gmra.mxu0 %v220
    %v242 = vpop.f32.mrf.mxu0
    %v243 = vadd.f32 %v214, %v242
    %244 = vdwg.mxu0
    %v245 = vld [vmem:[#allocation6] sm:$0x1]
    %247 = vrot.lane.b32.xlu0 %v240, 96
    %v248 = vpop.permute.xlu0 %247
    %vm249 = vcmask 130048
    %v250 = vsel %vm249, %v240, 0
    %v252 = vsel %vm249, %v248, 0
    %254 = vmatpush.xpose.msra.mxu0 0.0
    %255 = vmatpush.xpose.msra.mxu0 0.0
    %256 = vmatpush.xpose.msra.mxu0 0.0
    %257 = vmatpush.xpose.msra.mxu0 0.0
    %258 = vmatpush.xpose.msra.mxu0 0.0
    %259 = vmatpush.xpose.msra.mxu0 0.0
    %260 = vmatpush.xpose.msra.mxu0 0.0
    %261 = vmatpush.xpose.msra.mxu0 0.0
    %262 = vmatpush.xpose.msra.mxu0 0.0
    %263 = vmatpush.xpose.msra.mxu0 0.0
    %264 = vmatpush.xpose.msra.mxu0 0.0
    %265 = vmatpush.xpose.msra.mxu0 0.0
    %266 = vmatpush.xpose.msra.mxu0 0.0
    %267 = vmatpush.xpose.msra.mxu0 0.0
    %268 = vmatpush.xpose.msra.mxu0 0.0
    %269 = vmatpush.xpose.msra.mxu0 %v252
    %270 = vmatmul.f32.gmra.mxu0 %v250
    %v271 = vpop.f32.mrf.mxu0
    %v272 = vadd.f32 0.0, %v271
    %273 = vdwg.mxu0
    %v274 = vmul.f32 %v272, 0.25
    %v275 = vperm.slane %v245, 0
    %v276 = vadd.f32 %v274, %v275
    %vm277 = vcmask 64512
    %v278 = vsel %vm277, %v276, -inf
    %279 = vmax.xlane.f32.xlu0 %v278
    %v280 = vpop.xlane.xlu0 %279
    %v281 = vsub.f32 %v276, %v280
    %v282 = vmul.f32 %v281, 1.442695
    %v283 = vpow.pop %v282
    %v284 = vsel %vm277, %v283, 0.0
    %285 = vadd.xlane.f32.xlu0 %v284
    %v286 = vpop.xlane.xlu0 %285
    %v287 = vrcp.pop %v286
    %v288 = vmul.f32 %v286, %v287
    %v289 = vsub.f32 1.0, %v288
    %v290 = vmul.f32 %v287, %v289
    %v291 = vadd.f32 %v287, %v290
    %vm292 = vweird.f32 %v286
    %vm293 = vweird.f32 %v287
    %vm294 = vmor %vm292, %vm293
    %v295 = vsel %vm294, %v287, %v291
    %v296 = vand.u32 2147483647, %v286
    %vm297 = vcmp.eq.f32.partialorder %v296, 8.507059e+37
    %v298 = vand.u32 %v286, 2147483648
    %v299 = vor.u32 1.1754944e-38, %v298
    %v300 = vsel %vm297, %v299, %v295
    %v301 = vmul.f32 %v283, %v300
    %302 = vrot.lane.b32.xlu0 %v240, 64
    %v303 = vpop.permute.xlu0 %302
    %v306 = vsel %vm277, %v301, 0
    %308 = vmatpush.msra.mxu0 0.0
    %309 = vmatpush.msra.mxu0 0.0
    %310 = vmatpush.msra.mxu0 0.0
    %311 = vmatpush.msra.mxu0 0.0
    %312 = vmatpush.msra.mxu0 0.0
    %313 = vmatpush.msra.mxu0 0.0
    %314 = vmatpush.msra.mxu0 0.0
    %315 = vmatpush.msra.mxu0 0.0
    %316 = vmatpush.msra.mxu0 0.0
    %317 = vmatpush.msra.mxu0 0.0
    %318 = vmatpush.msra.mxu0 0.0
    %319 = vmatpush.msra.mxu0 0.0
    %320 = vmatpush.msra.mxu0 0.0
    %321 = vmatpush.msra.mxu0 0.0
    %322 = vmatpush.msra.mxu0 0.0
    %323 = vmatpush.msra.mxu0 %v303
    %324 = vmatmul.f32.gmra.mxu0 %v306
    %v325 = vpop.f32.mrf.mxu0
    %v326 = vadd.f32 0.0, %v325
    %327 = vdwg.mxu0
    %328 = vst.msk [vmem:[#allocation2] sm:$0xff] %vm249, %v326
    %329 = vrot.lane.b32.xlu0 %v240, 112
    %v330 = vpop.permute.xlu0 %329
    %331 = vrot.lane.b32.xlu0 %v240, 80
    %v332 = vpop.permute.xlu0 %331
    %v333 = vsel %vm249, %v330, 0
    %v335 = vsel %vm249, %v332, 0
    %337 = vmatpush.xpose.msra.mxu0 0.0
    %338 = vmatpush.xpose.msra.mxu0 0.0
    %339 = vmatpush.xpose.msra.mxu0 0.0
    %340 = vmatpush.xpose.msra.mxu0 0.0
    %341 = vmatpush.xpose.msra.mxu0 0.0
    %342 = vmatpush.xpose.msra.mxu0 0.0
    %343 = vmatpush.xpose.msra.mxu0 0.0
    %344 = vmatpush.xpose.msra.mxu0 0.0
    %345 = vmatpush.xpose.msra.mxu0 0.0
    %346 = vmatpush.xpose.msra.mxu0 0.0
    %347 = vmatpush.xpose.msra.mxu0 0.0
    %348 = vmatpush.xpose.msra.mxu0 0.0
    %349 = vmatpush.xpose.msra.mxu0 0.0
    %350 = vmatpush.xpose.msra.mxu0 0.0
    %351 = vmatpush.xpose.msra.mxu0 0.0
    %352 = vmatpush.xpose.msra.mxu0 %v335
    %353 = vmatmul.f32.gmra.mxu0 %v333
    %v354 = vpop.f32.mrf.mxu0
    %v355 = vadd.f32 0.0, %v354
    %356 = vdwg.mxu0
    %v357 = vmul.f32 %v355, 0.25
    %v358 = vadd.f32 %v357, %v275
    %v359 = vsel %vm277, %v358, -inf
    %360 = vmax.xlane.f32.xlu0 %v359
    %v361 = vpop.xlane.xlu0 %360
    %v362 = vsub.f32 %v358, %v361
    %v363 = vmul.f32 %v362, 1.442695
    %v364 = vpow.pop %v363
    %v365 = vsel %vm277, %v364, 0.0
    %366 = vadd.xlane.f32.xlu0 %v365
    %v367 = vpop.xlane.xlu0 %366
    %v368 = vrcp.pop %v367
    %v369 = vmul.f32 %v367, %v368
    %v370 = vsub.f32 1.0, %v369
    %v371 = vmul.f32 %v368, %v370
    %v372 = vadd.f32 %v368, %v371
    %vm373 = vweird.f32 %v367
    %vm374 = vweird.f32 %v368
    %vm375 = vmor %vm373, %vm374
    %v376 = vsel %vm375, %v368, %v372
    %v377 = vand.u32 2147483647, %v367
    %vm378 = vcmp.eq.f32.partialorder %v377, 8.507059e+37
    %v379 = vand.u32 %v367, 2147483648
    %v380 = vor.u32 1.1754944e-38, %v379
    %v381 = vsel %vm378, %v380, %v376
    %v382 = vmul.f32 %v364, %v381
    %383 = vrot.lane.b32.xlu0 %v240, 48
    %v384 = vpop.permute.xlu0 %383
    %v387 = vsel %vm277, %v382, 0
    %389 = vmatpush.msra.mxu0 0.0
    %390 = vmatpush.msra.mxu0 0.0
    %391 = vmatpush.msra.mxu0 0.0
    %392 = vmatpush.msra.mxu0 0.0
    %393 = vmatpush.msra.mxu0 0.0
    %394 = vmatpush.msra.mxu0 0.0
    %395 = vmatpush.msra.mxu0 0.0
    %396 = vmatpush.msra.mxu0 0.0
    %397 = vmatpush.msra.mxu0 0.0
    %398 = vmatpush.msra.mxu0 0.0
    %399 = vmatpush.msra.mxu0 0.0
    %400 = vmatpush.msra.mxu0 0.0
    %401 = vmatpush.msra.mxu0 0.0
    %402 = vmatpush.msra.mxu0 0.0
    %403 = vmatpush.msra.mxu0 0.0
    %404 = vmatpush.msra.mxu0 %v384
    %405 = vmatmul.f32.gmra.mxu0 %v387
    %v406 = vpop.f32.mrf.mxu0
    %v407 = vadd.f32 0.0, %v406
    %408 = vdwg.mxu0
    %410 = vrot.lane.b32.xlu0 %v407, 16
    %v411 = vpop.permute.xlu0 %410
    %vm413 = vcmask 261248
    %414 = vst.msk [vmem:[#allocation2] sm:$0xff] %vm413, %v411
    %v415 = vld [vmem:[#allocation6 + $0x1] sm:$0x1]
    %417 = vrot.lane.b32.xlu0 %v243, 96
    %v418 = vpop.permute.xlu0 %417
    %v419 = vsel %vm249, %v243, 0
    %v421 = vsel %vm249, %v418, 0
    %423 = vmatpush.xpose.msra.mxu0 0.0
    %424 = vmatpush.xpose.msra.mxu0 0.0
    %425 = vmatpush.xpose.msra.mxu0 0.0
    %426 = vmatpush.xpose.msra.mxu0 0.0
    %427 = vmatpush.xpose.msra.mxu0 0.0
    %428 = vmatpush.xpose.msra.mxu0 0.0
    %429 = vmatpush.xpose.msra.mxu0 0.0
    %430 = vmatpush.xpose.msra.mxu0 0.0
    %431 = vmatpush.xpose.msra.mxu0 0.0
    %432 = vmatpush.xpose.msra.mxu0 0.0
    %433 = vmatpush.xpose.msra.mxu0 0.0
    %434 = vmatpush.xpose.msra.mxu0 0.0
    %435 = vmatpush.xpose.msra.mxu0 0.0
    %436 = vmatpush.xpose.msra.mxu0 0.0
    %437 = vmatpush.xpose.msra.mxu0 0.0
    %438 = vmatpush.xpose.msra.mxu0 %v421
    %439 = vmatmul.f32.gmra.mxu0 %v419
    %v440 = vpop.f32.mrf.mxu0
    %v441 = vadd.f32 0.0, %v440
    %442 = vdwg.mxu0
    %v443 = vmul.f32 %v441, 0.25
    %v444 = vperm.slane %v415, 0
    %v445 = vadd.f32 %v443, %v444
    %v446 = vsel %vm277, %v445, -inf
    %447 = vmax.xlane.f32.xlu0 %v446
    %v448 = vpop.xlane.xlu0 %447
    %v449 = vsub.f32 %v445, %v448
    %v450 = vmul.f32 %v449, 1.442695
    %v451 = vpow.pop %v450
    %v452 = vsel %vm277, %v451, 0.0
    %453 = vadd.xlane.f32.xlu0 %v452
    %v454 = vpop.xlane.xlu0 %453
    %v455 = vrcp.pop %v454
    %v456 = vmul.f32 %v454, %v455
    %v457 = vsub.f32 1.0, %v456
    %v458 = vmul.f32 %v455, %v457
    %v459 = vadd.f32 %v455, %v458
    %vm460 = vweird.f32 %v454
    %vm461 = vweird.f32 %v455
    %vm462 = vmor %vm460, %vm461
    %v463 = vsel %vm462, %v455, %v459
    %v464 = vand.u32 2147483647, %v454
    %vm465 = vcmp.eq.f32.partialorder %v464, 8.507059e+37
    %v466 = vand.u32 %v454, 2147483648
    %v467 = vor.u32 1.1754944e-38, %v466
    %v468 = vsel %vm465, %v467, %v463
    %v469 = vmul.f32 %v451, %v468
    %470 = vrot.lane.b32.xlu0 %v243, 64
    %v471 = vpop.permute.xlu0 %470
    %v474 = vsel %vm277, %v469, 0
    %476 = vmatpush.msra.mxu0 0.0
    %477 = vmatpush.msra.mxu0 0.0
    %478 = vmatpush.msra.mxu0 0.0
    %479 = vmatpush.msra.mxu0 0.0
    %480 = vmatpush.msra.mxu0 0.0
    %481 = vmatpush.msra.mxu0 0.0
    %482 = vmatpush.msra.mxu0 0.0
    %483 = vmatpush.msra.mxu0 0.0
    %484 = vmatpush.msra.mxu0 0.0
    %485 = vmatpush.msra.mxu0 0.0
    %486 = vmatpush.msra.mxu0 0.0
    %487 = vmatpush.msra.mxu0 0.0
    %488 = vmatpush.msra.mxu0 0.0
    %489 = vmatpush.msra.mxu0 0.0
    %490 = vmatpush.msra.mxu0 0.0
    %491 = vmatpush.msra.mxu0 %v471
    %492 = vmatmul.f32.gmra.mxu0 %v474
    %v493 = vpop.f32.mrf.mxu0
    %v494 = vadd.f32 0.0, %v493
    %495 = vdwg.mxu0
    %496 = vst.msk [vmem:[#allocation2 + $0x8] sm:$0xff] %vm249, %v494
    %497 = vrot.lane.b32.xlu0 %v243, 112
    %v498 = vpop.permute.xlu0 %497
    %499 = vrot.lane.b32.xlu0 %v243, 80
    %v500 = vpop.permute.xlu0 %499
    %v501 = vsel %vm249, %v498, 0
    %v503 = vsel %vm249, %v500, 0
    %505 = vmatpush.xpose.msra.mxu0 0.0
    %506 = vmatpush.xpose.msra.mxu0 0.0
    %507 = vmatpush.xpose.msra.mxu0 0.0
    %508 = vmatpush.xpose.msra.mxu0 0.0
    %509 = vmatpush.xpose.msra.mxu0 0.0
    %510 = vmatpush.xpose.msra.mxu0 0.0
    %511 = vmatpush.xpose.msra.mxu0 0.0
    %512 = vmatpush.xpose.msra.mxu0 0.0
    %513 = vmatpush.xpose.msra.mxu0 0.0
    %514 = vmatpush.xpose.msra.mxu0 0.0
    %515 = vmatpush.xpose.msra.mxu0 0.0
    %516 = vmatpush.xpose.msra.mxu0 0.0
    %517 = vmatpush.xpose.msra.mxu0 0.0
    %518 = vmatpush.xpose.msra.mxu0 0.0
    %519 = vmatpush.xpose.msra.mxu0 0.0
    %520 = vmatpush.xpose.msra.mxu0 %v503
    %521 = vmatmul.f32.gmra.mxu0 %v501
    %v522 = vpop.f32.mrf.mxu0
    %v523 = vadd.f32 0.0, %v522
    %524 = vdwg.mxu0
    %v525 = vmul.f32 %v523, 0.25
    %v526 = vadd.f32 %v525, %v444
    %v527 = vsel %vm277, %v526, -inf
    %528 = vmax.xlane.f32.xlu0 %v527
    %v529 = vpop.xlane.xlu0 %528
    %v530 = vsub.f32 %v526, %v529
    %v531 = vmul.f32 %v530, 1.442695
    %v532 = vpow.pop %v531
    %v533 = vsel %vm277, %v532, 0.0
    %534 = vadd.xlane.f32.xlu0 %v533
    %v535 = vpop.xlane.xlu0 %534
    %v536 = vrcp.pop %v535
    %v537 = vmul.f32 %v535, %v536
    %v538 = vsub.f32 1.0, %v537
    %v539 = vmul.f32 %v536, %v538
    %v540 = vadd.f32 %v536, %v539
    %vm541 = vweird.f32 %v535
    %vm542 = vweird.f32 %v536
    %vm543 = vmor %vm541, %vm542
    %v544 = vsel %vm543, %v536, %v540
    %v545 = vand.u32 2147483647, %v535
    %vm546 = vcmp.eq.f32.partialorder %v545, 8.507059e+37
    %v547 = vand.u32 %v535, 2147483648
    %v548 = vor.u32 1.1754944e-38, %v547
    %v549 = vsel %vm546, %v548, %v544
    %v550 = vmul.f32 %v532, %v549
    %551 = vrot.lane.b32.xlu0 %v243, 48
    %v552 = vpop.permute.xlu0 %551
    %v555 = vsel %vm277, %v550, 0
    %557 = vmatpush.msra.mxu0 0.0
    %558 = vmatpush.msra.mxu0 0.0
    %559 = vmatpush.msra.mxu0 0.0
    %560 = vmatpush.msra.mxu0 0.0
    %561 = vmatpush.msra.mxu0 0.0
    %562 = vmatpush.msra.mxu0 0.0
    %563 = vmatpush.msra.mxu0 0.0
    %564 = vmatpush.msra.mxu0 0.0
    %565 = vmatpush.msra.mxu0 0.0
    %566 = vmatpush.msra.mxu0 0.0
    %567 = vmatpush.msra.mxu0 0.0
    %568 = vmatpush.msra.mxu0 0.0
    %569 = vmatpush.msra.mxu0 0.0
    %570 = vmatpush.msra.mxu0 0.0
    %571 = vmatpush.msra.mxu0 0.0
    %572 = vmatpush.msra.mxu0 %v552
    %573 = vmatmul.f32.gmra.mxu0 %v555
    %v574 = vpop.f32.mrf.mxu0
    %v575 = vadd.f32 0.0, %v574
    %576 = vdwg.mxu0
    %578 = vrot.lane.b32.xlu0 %v575, 16
    %v579 = vpop.permute.xlu0 %578
    %581 = vst.msk [vmem:[#allocation2 + $0x8] sm:$0xff] %vm413, %v579
    %v582 = vld [vmem:[#allocation2] sm:$0xff]
    %v583 = vld [vmem:[#allocation2 + $0x8] sm:$0xff]
    %v584 = vld [vmem:[%s6] sm:$0xff]
    %v585 = vld [vmem:[%s6 + $0x8] sm:$0xff]
    %v586 = vld [vmem:[%s6 + $0x10] sm:$0xff]
    %v587 = vld [vmem:[%s6 + $0x18] sm:$0xff]
    %v588 = vld [vmem:[%s7] sm:$0x1]
    %v590 = vperm.slane %v588, 0
    %v593 = vsel %vm146, %v582, 0
    %v596 = vsel %vm146, %v583, 0
    %598 = vmatpush.msra.mxu0 0.0
    %599 = vmatpush.msra.mxu0 0.0
    %600 = vmatpush.msra.mxu0 0.0
    %601 = vmatpush.msra.mxu0 0.0
    %602 = vmatpush.msra.mxu0 0.0
    %603 = vmatpush.msra.mxu0 0.0
    %604 = vmatpush.msra.mxu0 0.0
    %605 = vmatpush.msra.mxu0 0.0
    %606 = vmatpush.msra.mxu0 0.0
    %607 = vmatpush.msra.mxu0 0.0
    %608 = vmatpush.msra.mxu0 0.0
    %609 = vmatpush.msra.mxu0 0.0
    %610 = vmatpush.msra.mxu0 %v587
    %611 = vmatpush.msra.mxu0 %v586
    %612 = vmatpush.msra.mxu0 %v585
    %613 = vmatpush.msra.mxu0 %v584
    %614 = vmatmul.f32.gmra.mxu0 %v593
    %v615 = vpop.f32.mrf.mxu0
    %v616 = vadd.f32 %v590, %v615
    %617 = vmatmul.f32.gmra.mxu0 %v596
    %v618 = vpop.f32.mrf.mxu0
    %v619 = vadd.f32 %v590, %v618
    %620 = vdwg.mxu0
    %v621 = vadd.f32 %v616, %v206
    %v622 = vadd.f32 %v619, %v207
    %v623 = vld [vmem:[#allocation11] sm:$0x1]
    %v624 = vld [vmem:[%s9] sm:$0x1]
    %v625 = vsel %vm146, %v621, 0.0
    %626 = vadd.xlane.f32.xlu0 %v625
    %v627 = vpop.xlane.xlu0 %626
    %v628 = vsel %vm146, %v622, 0.0
    %629 = vadd.xlane.f32.xlu0 %v628
    %v630 = vpop.xlane.xlu0 %629
    %v631 = vmul.f32 %v627, %v159
    %v632 = vmul.f32 %v630, %v159
    %v633 = vsub.f32 %v621, %v631
    %v634 = vsub.f32 %v622, %v632
    %v635 = vmul.f32 %v633, %v633
    %v636 = vmul.f32 %v634, %v634
    %v637 = vsel %vm146, %v635, 0.0
    %638 = vadd.xlane.f32.xlu0 %v637
    %v639 = vpop.xlane.xlu0 %638
    %v640 = vsel %vm146, %v636, 0.0
    %641 = vadd.xlane.f32.xlu0 %v640
    %v642 = vpop.xlane.xlu0 %641
    %v643 = vmul.f32 %v639, %v159
    %v644 = vmul.f32 %v642, %v159
    %v645 = vadd.f32 %v643, 1e-12
    %v646 = vadd.f32 %v644, 1e-12
    %v647 = vrsqrt.pop %v645
    %v648 = vmul.f32 %v647, %v645
    %v649 = vmul.f32 %v648, %v647
    %v650 = vmul.f32 0.5, %v649
    %v651 = vsub.f32 1.5, %v650
    %v652 = vmul.f32 %v647, %v651
    %vm653 = vweird.f32 %v645
    %vm654 = vweird.f32 %v647
    %vm655 = vmor %vm653, %vm654
    %v656 = vsel %vm655, %v647, %v652
    %v657 = vrsqrt.pop %v646
    %v658 = vmul.f32 %v657, %v646
    %v659 = vmul.f32 %v658, %v657
    %v660 = vmul.f32 0.5, %v659
    %v661 = vsub.f32 1.5, %v660
    %v662 = vmul.f32 %v657, %v661
    %vm663 = vweird.f32 %v646
    %vm664 = vweird.f32 %v657
    %vm665 = vmor %vm663, %vm664
    %v666 = vsel %vm665, %v657, %v662
    %v667 = vmul.f32 %v633, %v656
    %v668 = vmul.f32 %v634, %v666
    %v670 = vperm.slane %v623, 0
    %v672 = vmul.f32 %v667, %v670
    %v673 = vmul.f32 %v668, %v670
    %v675 = vperm.slane %v624, 0
    %v677 = vadd.f32 %v672, %v675
    %v678 = vadd.f32 %v673, %v675
    %v679 = vld [vmem:[%s10] sm:$0xff]
    %v680 = vld [vmem:[%s10 + $0x8] sm:$0xff]
    %v681 = vld [vmem:[%s10 + $0x10] sm:$0xff]
    %v682 = vld [vmem:[%s10 + $0x18] sm:$0xff]
    %v683 = vld [vmem:[%s11] sm:$0x1]
    %v685 = vperm.slane %v683, 0
    %v688 = vsel %vm146, %v677, 0
    %v691 = vsel %vm146, %v678, 0
    %693 = vmatpush.msra.mxu0 0.0
    %694 = vmatpush.msra.mxu0 0.0
    %695 = vmatpush.msra.mxu0 0.0
    %696 = vmatpush.msra.mxu0 0.0
    %697 = vmatpush.msra.mxu0 0.0
    %698 = vmatpush.msra.mxu0 0.0
    %699 = vmatpush.msra.mxu0 0.0
    %700 = vmatpush.msra.mxu0 0.0
    %701 = vmatpush.msra.mxu0 0.0
    %702 = vmatpush.msra.mxu0 0.0
    %703 = vmatpush.msra.mxu0 0.0
    %704 = vmatpush.msra.mxu0 0.0
    %705 = vmatpush.msra.mxu0 %v682
    %706 = vmatpush.msra.mxu0 %v681
    %707 = vmatpush.msra.mxu0 %v680
    %708 = vmatpush.msra.mxu0 %v679
    %709 = vmatmul.f32.gmra.mxu0 %v688
    %v710 = vpop.f32.mrf.mxu0
    %v711 = vadd.f32 %v685, %v710
    %712 = vmatmul.f32.gmra.mxu0 %v691
    %v713 = vpop.f32.mrf.mxu0
    %v714 = vadd.f32 %v685, %v713
    %715 = vdwg.mxu0
    %v716 = vmul.f32 %v711, 0.5
    %v717 = vmul.f32 %v714, 0.5
    %v718 = vmul.f32 %v711, 0.044715
    %v719 = vmul.f32 %v714, 0.044715
    %v720 = vmul.f32 %v718, %v711
    %v721 = vmul.f32 %v719, %v714
    %v722 = vmul.f32 %v720, %v711
    %v723 = vmul.f32 %v721, %v714
    %v724 = vadd.f32 %v711, %v722
    %v725 = vadd.f32 %v714, %v723
    %v726 = vmul.f32 %v724, 0.7978846
    %v727 = vmul.f32 %v725, 0.7978846
    %v728 = vtanh.pop %v726
    %v729 = vtanh.pop %v727
    %v730 = vadd.f32 %v728, 1.0
    %v731 = vadd.f32 %v729, 1.0
    %v732 = vmul.f32 %v716, %v730
    %v733 = vmul.f32 %v717, %v731
    %v734 = vld [vmem:[%s12] sm:$0xff]
    %v735 = vld [vmem:[%s12 + $0x8] sm:$0xff]
    %v736 = vld [vmem:[%s12 + $0x10] sm:$0xff]
    %v737 = vld [vmem:[%s12 + $0x18] sm:$0xff]
    %v738 = vld [vmem:[%s12 + $0x20] sm:$0xff]
    %v739 = vld [vmem:[%s12 + $0x28] sm:$0xff]
    %v740 = vld [vmem:[%s12 + $0x30] sm:$0xff]
    %v741 = vld [vmem:[%s12 + $0x38] sm:$0xff]
    %v742 = vld [vmem:[%s13] sm:$0x1]
    %v744 = vperm.slane %v742, 0
    %vm746 = vcmask 523264
    %v748 = vsel %vm746, %v732, 0
    %v751 = vsel %vm746, %v733, 0
    %753 = vmatpush.msra.mxu0 0.0
    %754 = vmatpush.msra.mxu0 0.0
    %755 = vmatpush.msra.mxu0 0.0
    %756 = vmatpush.msra.mxu0 0.0
    %757 = vmatpush.msra.mxu0 0.0
    %758 = vmatpush.msra.mxu0 0.0
    %759 = vmatpush.msra.mxu0 0.0
    %760 = vmatpush.msra.mxu0 0.0
    %761 = vmatpush.msra.mxu0 %v741
    %762 = vmatpush.msra.mxu0 %v740
    %763 = vmatpush.msra.mxu0 %v739
    %764 = vmatpush.msra.mxu0 %v738
    %765 = vmatpush.msra.mxu0 %v737
    %766 = vmatpush.msra.mxu0 %v736
    %767 = vmatpush.msra.mxu0 %v735
    %768 = vmatpush.msra.mxu0 %v734
    %769 = vmatmul.f32.gmra.mxu0 %v748
    %v770 = vpop.f32.mrf.mxu0
    %v771 = vadd.f32 %v744, %v770
    %772 = vmatmul.f32.gmra.mxu0 %v751
    %v773 = vpop.f32.mrf.mxu0
    %v774 = vadd.f32 %v744, %v773
    %775 = vdwg.mxu0
    %v776 = vadd.f32 %v771, %v677
    %v777 = vadd.f32 %v774, %v678
    %v778 = vld [vmem:[#allocation12] sm:$0x1]
    %v779 = vld [vmem:[%s15] sm:$0x1]
    %v780 = vsel %vm146, %v776, 0.0
    %781 = vadd.xlane.f32.xlu0 %v780
    %v782 = vpop.xlane.xlu0 %781
    %v783 = vsel %vm146, %v777, 0.0
    %784 = vadd.xlane.f32.xlu0 %v783
    %v785 = vpop.xlane.xlu0 %784
    %v786 = vmul.f32 %v782, %v159
    %v787 = vmul.f32 %v785, %v159
    %v788 = vsub.f32 %v776, %v786
    %v789 = vsub.f32 %v777, %v787
    %v790 = vmul.f32 %v788, %v788
    %v791 = vmul.f32 %v789, %v789
    %v792 = vsel %vm146, %v790, 0.0
    %793 = vadd.xlane.f32.xlu0 %v792
    %v794 = vpop.xlane.xlu0 %793
    %v795 = vsel %vm146, %v791, 0.0
    %796 = vadd.xlane.f32.xlu0 %v795
    %v797 = vpop.xlane.xlu0 %796
    %v798 = vmul.f32 %v794, %v159
    %v799 = vmul.f32 %v797, %v159
    %v800 = vadd.f32 %v798, 1e-12
    %v801 = vadd.f32 %v799, 1e-12
    %v802 = vrsqrt.pop %v800
    %v803 = vmul.f32 %v802, %v800
    %v804 = vmul.f32 %v803, %v802
    %v805 = vmul.f32 0.5, %v804
    %v806 = vsub.f32 1.5, %v805
    %v807 = vmul.f32 %v802, %v806
    %vm808 = vweird.f32 %v800
    %vm809 = vweird.f32 %v802
    %vm810 = vmor %vm808, %vm809
    %v811 = vsel %vm810, %v802, %v807
    %v812 = vrsqrt.pop %v801
    %v813 = vmul.f32 %v812, %v801
    %v814 = vmul.f32 %v813, %v812
    %v815 = vmul.f32 0.5, %v814
    %v816 = vsub.f32 1.5, %v815
    %v817 = vmul.f32 %v812, %v816
    %vm818 = vweird.f32 %v801
    %vm819 = vweird.f32 %v812
    %vm820 = vmor %vm818, %vm819
    %v821 = vsel %vm820, %v812, %v817
    %v822 = vmul.f32 %v788, %v811
    %v823 = vmul.f32 %v789, %v821
    %v825 = vperm.slane %v778, 0
    %v827 = vmul.f32 %v822, %v825
    %v828 = vmul.f32 %v823, %v825
    %v830 = vperm.slane %v779, 0
    %v832 = vadd.f32 %v827, %v830
    %v833 = vadd.f32 %v828, %v830
    %s834 = scalar_lea.vmem %s4, 32
    %v835 = vld [vmem:[%s834] sm:$0xff]
    %v836 = vld [vmem:[%s834 + $0x8] sm:$0xff]
    %v837 = vld [vmem:[%s834 + $0x10] sm:$0xff]
    %v838 = vld [vmem:[%s834 + $0x18] sm:$0xff]
    %s839 = scalar_lea.vmem %s5, 1
    %v840 = vld [vmem:[%s839] sm:$0x1]
    %v842 = vperm.slane %v840, 0
    %v845 = vsel %vm146, %v832, 0
    %v848 = vsel %vm146, %v833, 0
    %850 = vmatpush.msra.mxu0 0.0
    %851 = vmatpush.msra.mxu0 0.0
    %852 = vmatpush.msra.mxu0 0.0
    %853 = vmatpush.msra.mxu0 0.0
    %854 = vmatpush.msra.mxu0 0.0
    %855 = vmatpush.msra.mxu0 0.0
    %856 = vmatpush.msra.mxu0 0.0
    %857 = vmatpush.msra.mxu0 0.0
    %858 = vmatpush.msra.mxu0 0.0
    %859 = vmatpush.msra.mxu0 0.0
    %860 = vmatpush.msra.mxu0 0.0
    %861 = vmatpush.msra.mxu0 0.0
    %862 = vmatpush.msra.mxu0 %v838
    %863 = vmatpush.msra.mxu0 %v837
    %864 = vmatpush.msra.mxu0 %v836
    %865 = vmatpush.msra.mxu0 %v835
    %866 = vmatmul.f32.gmra.mxu0 %v845
    %v867 = vpop.f32.mrf.mxu0
    %v868 = vadd.f32 %v842, %v867
    %869 = vmatmul.f32.gmra.mxu0 %v848
    %v870 = vpop.f32.mrf.mxu0
    %v871 = vadd.f32 %v842, %v870
    %872 = vdwg.mxu0
    %v873 = vld [vmem:[#allocation6] sm:$0x1]
    %875 = vrot.lane.b32.xlu0 %v868, 96
    %v876 = vpop.permute.xlu0 %875
    %v877 = vsel %vm249, %v868, 0
    %v879 = vsel %vm249, %v876, 0
    %881 = vmatpush.xpose.msra.mxu0 0.0
    %882 = vmatpush.xpose.msra.mxu0 0.0
    %883 = vmatpush.xpose.msra.mxu0 0.0
    %884 = vmatpush.xpose.msra.mxu0 0.0
    %885 = vmatpush.xpose.msra.mxu0 0.0
    %886 = vmatpush.xpose.msra.mxu0 0.0
    %887 = vmatpush.xpose.msra.mxu0 0.0
    %888 = vmatpush.xpose.msra.mxu0 0.0
    %889 = vmatpush.xpose.msra.mxu0 0.0
    %890 = vmatpush.xpose.msra.mxu0 0.0
    %891 = vmatpush.xpose.msra.mxu0 0.0
    %892 = vmatpush.xpose.msra.mxu0 0.0
    %893 = vmatpush.xpose.msra.mxu0 0.0
    %894 = vmatpush.xpose.msra.mxu0 0.0
    %895 = vmatpush.xpose.msra.mxu0 0.0
    %896 = vmatpush.xpose.msra.mxu0 %v879
    %897 = vmatmul.f32.gmra.mxu0 %v877
    %v898 = vpop.f32.mrf.mxu0
    %v899 = vadd.f32 0.0, %v898
    %900 = vdwg.mxu0
    %v901 = vmul.f32 %v899, 0.25
    %v902 = vperm.slane %v873, 0
    %v903 = vadd.f32 %v901, %v902
    %v904 = vsel %vm277, %v903, -inf
    %905 = vmax.xlane.f32.xlu0 %v904
    %v906 = vpop.xlane.xlu0 %905
    %v907 = vsub.f32 %v903, %v906
    %v908 = vmul.f32 %v907, 1.442695
    %v909 = vpow.pop %v908
    %v910 = vsel %vm277, %v909, 0.0
    %911 = vadd.xlane.f32.xlu0 %v910
    %v912 = vpop.xlane.xlu0 %911
    %v913 = vrcp.pop %v912
    %v914 = vmul.f32 %v912, %v913
    %v915 = vsub.f32 1.0, %v914
    %v916 = vmul.f32 %v913, %v915
    %v917 = vadd.f32 %v913, %v916
    %vm918 = vweird.f32 %v912
    %vm919 = vweird.f32 %v913
    %vm920 = vmor %vm918, %vm919
    %v921 = vsel %vm920, %v913, %v917
    %v922 = vand.u32 2147483647, %v912
    %vm923 = vcmp.eq.f32.partialorder %v922, 8.507059e+37
    %v924 = vand.u32 %v912, 2147483648
    %v925 = vor.u32 1.1754944e-38, %v924
    %v926 = vsel %vm923, %v925, %v921
    %v927 = vmul.f32 %v909, %v926
    %928 = vrot.lane.b32.xlu0 %v868, 64
    %v929 = vpop.permute.xlu0 %928
    %v932 = vsel %vm277, %v927, 0
    %934 = vmatpush.msra.mxu0 0.0
    %935 = vmatpush.msra.mxu0 0.0
    %936 = vmatpush.msra.mxu0 0.0
    %937 = vmatpush.msra.mxu0 0.0
    %938 = vmatpush.msra.mxu0 0.0
    %939 = vmatpush.msra.mxu0 0.0
    %940 = vmatpush.msra.mxu0 0.0
    %941 = vmatpush.msra.mxu0 0.0
    %942 = vmatpush.msra.mxu0 0.0
    %943 = vmatpush.msra.mxu0 0.0
    %944 = vmatpush.msra.mxu0 0.0
    %945 = vmatpush.msra.mxu0 0.0
    %946 = vmatpush.msra.mxu0 0.0
    %947 = vmatpush.msra.mxu0 0.0
    %948 = vmatpush.msra.mxu0 0.0
    %949 = vmatpush.msra.mxu0 %v929
    %950 = vmatmul.f32.gmra.mxu0 %v932
    %v951 = vpop.f32.mrf.mxu0
    %v952 = vadd.f32 0.0, %v951
    %953 = vdwg.mxu0
    %954 = vst.msk [vmem:[#allocation2] sm:$0xff] %vm249, %v952
    %955 = vrot.lane.b32.xlu0 %v868, 112
    %v956 = vpop.permute.xlu0 %955
    %957 = vrot.lane.b32.xlu0 %v868, 80
    %v958 = vpop.permute.xlu0 %957
    %v959 = vsel %vm249, %v956, 0
    %v961 = vsel %vm249, %v958, 0
    %963 = vmatpush.xpose.msra.mxu0 0.0
    %964 = vmatpush.xpose.msra.mxu0 0.0
    %965 = vmatpush.xpose.msra.mxu0 0.0
    %966 = vmatpush.xpose.msra.mxu0 0.0
    %967 = vmatpush.xpose.msra.mxu0 0.0
    %968 = vmatpush.xpose.msra.mxu0 0.0
    %969 = vmatpush.xpose.msra.mxu0 0.0
    %970 = vmatpush.xpose.msra.mxu0 0.0
    %971 = vmatpush.xpose.msra.mxu0 0.0
    %972 = vmatpush.xpose.msra.mxu0 0.0
    %973 = vmatpush.xpose.msra.mxu0 0.0
    %974 = vmatpush.xpose.msra.mxu0 0.0
    %975 = vmatpush.xpose.msra.mxu0 0.0
    %976 = vmatpush.xpose.msra.mxu0 0.0
    %977 = vmatpush.xpose.msra.mxu0 0.0
    %978 = vmatpush.xpose.msra.mxu0 %v961
    %979 = vmatmul.f32.gmra.mxu0 %v959
    %v980 = vpop.f32.mrf.mxu0
    %v981 = vadd.f32 0.0, %v980
    %982 = vdwg.mxu0
    %v983 = vmul.f32 %v981, 0.25
    %v984 = vadd.f32 %v983, %v902
    %v985 = vsel %vm277, %v984, -inf
    %986 = vmax.xlane.f32.xlu0 %v985
    %v987 = vpop.xlane.xlu0 %986
    %v988 = vsub.f32 %v984, %v987
    %v989 = vmul.f32 %v988, 1.442695
    %v990 = vpow.pop %v989
    %v991 = vsel %vm277, %v990, 0.0
    %992 = vadd.xlane.f32.xlu0 %v991
    %v993 = vpop.xlane.xlu0 %992
    %v994 = vrcp.pop %v993
    %v995 = vmul.f32 %v993, %v994
    %v996 = vsub.f32 1.0, %v995
    %v997 = vmul.f32 %v994, %v996
    %v998 = vadd.f32 %v994, %v997
    %vm999 = vweird.f32 %v993
    %vm1000 = vweird.f32 %v994
    %vm1001 = vmor %vm999, %vm1000
    %v1002 = vsel %vm1001, %v994, %v998
    %v1003 = vand.u32 2147483647, %v993
    %vm1004 = vcmp.eq.f32.partialorder %v1003, 8.507059e+37
    %v1005 = vand.u32 %v993, 2147483648
    %v1006 = vor.u32 1.1754944e-38, %v1005
    %v1007 = vsel %vm1004, %v1006, %v1002
    %v1008 = vmul.f32 %v990, %v1007
    %1009 = vrot.lane.b32.xlu0 %v868, 48
    %v1010 = vpop.permute.xlu0 %1009
    %v1013 = vsel %vm277, %v1008, 0
    %1015 = vmatpush.msra.mxu0 0.0
    %1016 = vmatpush.msra.mxu0 0.0
    %1017 = vmatpush.msra.mxu0 0.0
    %1018 = vmatpush.msra.mxu0 0.0
    %1019 = vmatpush.msra.mxu0 0.0
    %1020 = vmatpush.msra.mxu0 0.0
    %1021 = vmatpush.msra.mxu0 0.0
    %1022 = vmatpush.msra.mxu0 0.0
    %1023 = vmatpush.msra.mxu0 0.0
    %1024 = vmatpush.msra.mxu0 0.0
    %1025 = vmatpush.msra.mxu0 0.0
    %1026 = vmatpush.msra.mxu0 0.0
    %1027 = vmatpush.msra.mxu0 0.0
    %1028 = vmatpush.msra.mxu0 0.0
    %1029 = vmatpush.msra.mxu0 0.0
    %1030 = vmatpush.msra.mxu0 %v1010
    %1031 = vmatmul.f32.gmra.mxu0 %v1013
    %v1032 = vpop.f32.mrf.mxu0
    %v1033 = vadd.f32 0.0, %v1032
    %1034 = vdwg.mxu0
    %1036 = vrot.lane.b32.xlu0 %v1033, 16
    %v1037 = vpop.permute.xlu0 %1036
    %1039 = vst.msk [vmem:[#allocation2] sm:$0xff] %vm413, %v1037
    %v1040 = vld [vmem:[#allocation6 + $0x1] sm:$0x1]
    %1042 = vrot.lane.b32.xlu0 %v871, 96
    %v1043 = vpop.permute.xlu0 %1042
    %v1044 = vsel %vm249, %v871, 0
    %v1046 = vsel %vm249, %v1043, 0
    %1048 = vmatpush.xpose.msra.mxu0 0.0
    %1049 = vmatpush.xpose.msra.mxu0 0.0
    %1050 = vmatpush.xpose.msra.mxu0 0.0
    %1051 = vmatpush.xpose.msra.mxu0 0.0
    %1052 = vmatpush.xpose.msra.mxu0 0.0
    %1053 = vmatpush.xpose.msra.mxu0 0.0
    %1054 = vmatpush.xpose.msra.mxu0 0.0
    %1055 = vmatpush.xpose.msra.mxu0 0.0
    %1056 = vmatpush.xpose.msra.mxu0 0.0
    %1057 = vmatpush.xpose.msra.mxu0 0.0
    %1058 = vmatpush.xpose.msra.mxu0 0.0
    %1059 = vmatpush.xpose.msra.mxu0 0.0
    %1060 = vmatpush.xpose.msra.mxu0 0.0
    %1061 = vmatpush.xpose.msra.mxu0 0.0
    %1062 = vmatpush.xpose.msra.mxu0 0.0
    %1063 = vmatpush.xpose.msra.mxu0 %v1046
    %1064 = vmatmul.f32.gmra.mxu0 %v1044
    %v1065 = vpop.f32.mrf.mxu0
    %v1066 = vadd.f32 0.0, %v1065
    %1067 = vdwg.mxu0
    %v1068 = vmul.f32 %v1066, 0.25
    %v1069 = vperm.slane %v1040, 0
    %v1070 = vadd.f32 %v1068, %v1069
    %v1071 = vsel %vm277, %v1070, -inf
    %1072 = vmax.xlane.f32.xlu0 %v1071
    %v1073 = vpop.xlane.xlu0 %1072
    %v1074 = vsub.f32 %v1070, %v1073
    %v1075 = vmul.f32 %v1074, 1.442695
    %v1076 = vpow.pop %v1075
    %v1077 = vsel %vm277, %v1076, 0.0
    %1078 = vadd.xlane.f32.xlu0 %v1077
    %v1079 = vpop.xlane.xlu0 %1078
    %v1080 = vrcp.pop %v1079
    %v1081 = vmul.f32 %v1079, %v1080
    %v1082 = vsub.f32 1.0, %v1081
    %v1083 = vmul.f32 %v1080, %v1082
    %v1084 = vadd.f32 %v1080, %v1083
    %vm1085 = vweird.f32 %v1079
    %vm1086 = vweird.f32 %v1080
    %vm1087 = vmor %vm1085, %vm1086
    %v1088 = vsel %vm1087, %v1080, %v1084
    %v1089 = vand.u32 2147483647, %v1079
    %vm1090 = vcmp.eq.f32.partialorder %v1089, 8.507059e+37
    %v1091 = vand.u32 %v1079, 2147483648
    %v1092 = vor.u32 1.1754944e-38, %v1091
    %v1093 = vsel %vm1090, %v1092, %v1088
    %v1094 = vmul.f32 %v1076, %v1093
    %1095 = vrot.lane.b32.xlu0 %v871, 64
    %v1096 = vpop.permute.xlu0 %1095
    %v1099 = vsel %vm277, %v1094, 0
    %1101 = vmatpush.msra.mxu0 0.0
    %1102 = vmatpush.msra.mxu0 0.0
    %1103 = vmatpush.msra.mxu0 0.0
    %1104 = vmatpush.msra.mxu0 0.0
    %1105 = vmatpush.msra.mxu0 0.0
    %1106 = vmatpush.msra.mxu0 0.0
    %1107 = vmatpush.msra.mxu0 0.0
    %1108 = vmatpush.msra.mxu0 0.0
    %1109 = vmatpush.msra.mxu0 0.0
    %1110 = vmatpush.msra.mxu0 0.0
    %1111 = vmatpush.msra.mxu0 0.0
    %1112 = vmatpush.msra.mxu0 0.0
    %1113 = vmatpush.msra.mxu0 0.0
    %1114 = vmatpush.msra.mxu0 0.0
    %1115 = vmatpush.msra.mxu0 0.0
    %1116 = vmatpush.msra.mxu0 %v1096
    %1117 = vmatmul.f32.gmra.mxu0 %v1099
    %v1118 = vpop.f32.mrf.mxu0
    %v1119 = vadd.f32 0.0, %v1118
    %1120 = vdwg.mxu0
    %1121 = vst.msk [vmem:[#allocation2 + $0x8] sm:$0xff] %vm249, %v1119
    %1122 = vrot.lane.b32.xlu0 %v871, 112
    %v1123 = vpop.permute.xlu0 %1122
    %1124 = vrot.lane.b32.xlu0 %v871, 80
    %v1125 = vpop.permute.xlu0 %1124
    %v1126 = vsel %vm249, %v1123, 0
    %v1128 = vsel %vm249, %v1125, 0
    %1130 = vmatpush.xpose.msra.mxu0 0.0
    %1131 = vmatpush.xpose.msra.mxu0 0.0
    %1132 = vmatpush.xpose.msra.mxu0 0.0
    %1133 = vmatpush.xpose.msra.mxu0 0.0
    %1134 = vmatpush.xpose.msra.mxu0 0.0
    %1135 = vmatpush.xpose.msra.mxu0 0.0
    %1136 = vmatpush.xpose.msra.mxu0 0.0
    %1137 = vmatpush.xpose.msra.mxu0 0.0
    %1138 = vmatpush.xpose.msra.mxu0 0.0
    %1139 = vmatpush.xpose.msra.mxu0 0.0
    %1140 = vmatpush.xpose.msra.mxu0 0.0
    %1141 = vmatpush.xpose.msra.mxu0 0.0
    %1142 = vmatpush.xpose.msra.mxu0 0.0
    %1143 = vmatpush.xpose.msra.mxu0 0.0
    %1144 = vmatpush.xpose.msra.mxu0 0.0
    %1145 = vmatpush.xpose.msra.mxu0 %v1128
    %1146 = vmatmul.f32.gmra.mxu0 %v1126
    %v1147 = vpop.f32.mrf.mxu0
    %v1148 = vadd.f32 0.0, %v1147
    %1149 = vdwg.mxu0
    %v1150 = vmul.f32 %v1148, 0.25
    %v1151 = vadd.f32 %v1150, %v1069
    %v1152 = vsel %vm277, %v1151, -inf
    %1153 = vmax.xlane.f32.xlu0 %v1152
    %v1154 = vpop.xlane.xlu0 %1153
    %v1155 = vsub.f32 %v1151, %v1154
    %v1156 = vmul.f32 %v1155, 1.442695
    %v1157 = vpow.pop %v1156
    %v1158 = vsel %vm277, %v1157, 0.0
    %1159 = vadd.xlane.f32.xlu0 %v1158
    %v1160 = vpop.xlane.xlu0 %1159
    %v1161 = vrcp.pop %v1160
    %v1162 = vmul.f32 %v1160, %v1161
    %v1163 = vsub.f32 1.0, %v1162
    %v1164 = vmul.f32 %v1161, %v1163
    %v1165 = vadd.f32 %v1161, %v1164
    %vm1166 = vweird.f32 %v1160
    %vm1167 = vweird.f32 %v1161
    %vm1168 = vmor %vm1166, %vm1167
    %v1169 = vsel %vm1168, %v1161, %v1165
    %v1170 = vand.u32 2147483647, %v1160
    %vm1171 = vcmp.eq.f32.partialorder %v1170, 8.507059e+37
    %v1172 = vand.u32 %v1160, 2147483648
    %v1173 = vor.u32 1.1754944e-38, %v1172
    %v1174 = vsel %vm1171, %v1173, %v1169
    %v1175 = vmul.f32 %v1157, %v1174
    %1176 = vrot.lane.b32.xlu0 %v871, 48
    %v1177 = vpop.permute.xlu0 %1176
    %v1180 = vsel %vm277, %v1175, 0
    %1182 = vmatpush.msra.mxu0 0.0
    %1183 = vmatpush.msra.mxu0 0.0
    %1184 = vmatpush.msra.mxu0 0.0
    %1185 = vmatpush.msra.mxu0 0.0
    %1186 = vmatpush.msra.mxu0 0.0
    %1187 = vmatpush.msra.mxu0 0.0
    %1188 = vmatpush.msra.mxu0 0.0
    %1189 = vmatpush.msra.mxu0 0.0
    %1190 = vmatpush.msra.mxu0 0.0
    %1191 = vmatpush.msra.mxu0 0.0
    %1192 = vmatpush.msra.mxu0 0.0
    %1193 = vmatpush.msra.mxu0 0.0
    %1194 = vmatpush.msra.mxu0 0.0
    %1195 = vmatpush.msra.mxu0 0.0
    %1196 = vmatpush.msra.mxu0 0.0
    %1197 = vmatpush.msra.mxu0 %v1177
    %1198 = vmatmul.f32.gmra.mxu0 %v1180
    %v1199 = vpop.f32.mrf.mxu0
    %v1200 = vadd.f32 0.0, %v1199
    %1201 = vdwg.mxu0
    %1203 = vrot.lane.b32.xlu0 %v1200, 16
    %v1204 = vpop.permute.xlu0 %1203
    %1206 = vst.msk [vmem:[#allocation2 + $0x8] sm:$0xff] %vm413, %v1204
    %v1207 = vld [vmem:[#allocation2] sm:$0xff]
    %v1208 = vld [vmem:[#allocation2 + $0x8] sm:$0xff]
    %s1209 = scalar_lea.vmem %s6, 32
    %v1210 = vld [vmem:[%s1209] sm:$0xff]
    %v1211 = vld [vmem:[%s1209 + $0x8] sm:$0xff]
    %v1212 = vld [vmem:[%s1209 + $0x10] sm:$0xff]
    %v1213 = vld [vmem:[%s1209 + $0x18] sm:$0xff]
    %s1214 = scalar_lea.vmem %s7, 1
    %v1215 = vld [vmem:[%s1214] sm:$0x1]
    %v1217 = vperm.slane %v1215, 0
    %v1220 = vsel %vm146, %v1207, 0
    %v1223 = vsel %vm146, %v1208, 0
    %1225 = vmatpush.msra.mxu0 0.0
    %1226 = vmatpush.msra.mxu0 0.0
    %1227 = vmatpush.msra.mxu0 0.0
    %1228 = vmatpush.msra.mxu0 0.0
    %1229 = vmatpush.msra.mxu0 0.0
    %1230 = vmatpush.msra.mxu0 0.0
    %1231 = vmatpush.msra.mxu0 0.0
    %1232 = vmatpush.msra.mxu0 0.0
    %1233 = vmatpush.msra.mxu0 0.0
    %1234 = vmatpush.msra.mxu0 0.0
    %1235 = vmatpush.msra.mxu0 0.0
    %1236 = vmatpush.msra.mxu0 0.0
    %1237 = vmatpush.msra.mxu0 %v1213
    %1238 = vmatpush.msra.mxu0 %v1212
    %1239 = vmatpush.msra.mxu0 %v1211
    %1240 = vmatpush.msra.mxu0 %v1210
    %1241 = vmatmul.f32.gmra.mxu0 %v1220
    %v1242 = vpop.f32.mrf.mxu0
    %v1243 = vadd.f32 %v1217, %v1242
    %1244 = vmatmul.f32.gmra.mxu0 %v1223
    %v1245 = vpop.f32.mrf.mxu0
    %v1246 = vadd.f32 %v1217, %v1245
    %1247 = vdwg.mxu0
    %v1248 = vadd.f32 %v1243, %v832
    %v1249 = vadd.f32 %v1246, %v833
    %s1250 = scalar_lea.vmem [#allocation11], 1
    %v1251 = vld [vmem:[%s1250] sm:$0x1]
    %s1252 = scalar_lea.vmem %s9, 1
    %v1253 = vld [vmem:[%s1252] sm:$0x1]
    %v1254 = vsel %vm146, %v1248, 0.0
    %1255 = vadd.xlane.f32.xlu0 %v1254
    %v1256 = vpop.xlane.xlu0 %1255
    %v1257 = vsel %vm146, %v1249, 0.0
    %1258 = vadd.xlane.f32.xlu0 %v1257
    %v1259 = vpop.xlane.xlu0 %1258
    %v1260 = vmul.f32 %v1256, %v159
    %v1261 = vmul.f32 %v1259, %v159
    %v1262 = vsub.f32 %v1248, %v1260
    %v1263 = vsub.f32 %v1249, %v1261
    %v1264 = vmul.f32 %v1262, %v1262
    %v1265 = vmul.f32 %v1263, %v1263
    %v1266 = vsel %vm146, %v1264, 0.0
    %1267 = vadd.xlane.f32.xlu0 %v1266
    %v1268 = vpop.xlane.xlu0 %1267
    %v1269 = vsel %vm146, %v1265, 0.0
    %1270 = vadd.xlane.f32.xlu0 %v1269
    %v1271 = vpop.xlane.xlu0 %1270
    %v1272 = vmul.f32 %v1268, %v159
    %v1273 = vmul.f32 %v1271, %v159
    %v1274 = vadd.f32 %v1272, 1e-12
    %v1275 = vadd.f32 %v1273, 1e-12
    %v1276 = vrsqrt.pop %v1274
    %v1277 = vmul.f32 %v1276, %v1274
    %v1278 = vmul.f32 %v1277, %v1276
    %v1279 = vmul.f32 0.5, %v1278
    %v1280 = vsub.f32 1.5, %v1279
    %v1281 = vmul.f32 %v1276, %v1280
    %vm1282 = vweird.f32 %v1274
    %vm1283 = vweird.f32 %v1276
    %vm1284 = vmor %vm1282, %vm1283
    %v1285 = vsel %vm1284, %v1276, %v1281
    %v1286 = vrsqrt.pop %v1275
    %v1287 = vmul.f32 %v1286, %v1275
    %v1288 = vmul.f32 %v1287, %v1286
    %v1289 = vmul.f32 0.5, %v1288
    %v1290 = vsub.f32 1.5, %v1289
    %v1291 = vmul.f32 %v1286, %v1290
    %vm1292 = vweird.f32 %v1275
    %vm1293 = vweird.f32 %v1286
    %vm1294 = vmor %vm1292, %vm1293
    %v1295 = vsel %vm1294, %v1286, %v1291
    %v1296 = vmul.f32 %v1262, %v1285
    %v1297 = vmul.f32 %v1263, %v1295
    %v1299 = vperm.slane %v1251, 0
    %v1301 = vmul.f32 %v1296, %v1299
    %v1302 = vmul.f32 %v1297, %v1299
    %v1304 = vperm.slane %v1253, 0
    %v1306 = vadd.f32 %v1301, %v1304
    %v1307 = vadd.f32 %v1302, %v1304
    %s1308 = scalar_lea.vmem %s10, 32
    %v1309 = vld [vmem:[%s1308] sm:$0xff]
    %v1310 = vld [vmem:[%s1308 + $0x8] sm:$0xff]
    %v1311 = vld [vmem:[%s1308 + $0x10] sm:$0xff]
    %v1312 = vld [vmem:[%s1308 + $0x18] sm:$0xff]
    %s1313 = scalar_lea.vmem %s11, 1
    %v1314 = vld [vmem:[%s1313] sm:$0x1]
    %v1316 = vperm.slane %v1314, 0
    %v1319 = vsel %vm146, %v1306, 0
    %v1322 = vsel %vm146, %v1307, 0
    %1324 = vmatpush.msra.mxu0 0.0
    %1325 = vmatpush.msra.mxu0 0.0
    %1326 = vmatpush.msra.mxu0 0.0
    %1327 = vmatpush.msra.mxu0 0.0
    %1328 = vmatpush.msra.mxu0 0.0
    %1329 = vmatpush.msra.mxu0 0.0
    %1330 = vmatpush.msra.mxu0 0.0
    %1331 = vmatpush.msra.mxu0 0.0
    %1332 = vmatpush.msra.mxu0 0.0
    %1333 = vmatpush.msra.mxu0 0.0
    %1334 = vmatpush.msra.mxu0 0.0
    %1335 = vmatpush.msra.mxu0 0.0
    %1336 = vmatpush.msra.mxu0 %v1312
    %1337 = vmatpush.msra.mxu0 %v1311
    %1338 = vmatpush.msra.mxu0 %v1310
    %1339 = vmatpush.msra.mxu0 %v1309
    %1340 = vmatmul.f32.gmra.mxu0 %v1319
    %v1341 = vpop.f32.mrf.mxu0
    %v1342 = vadd.f32 %v1316, %v1341
    %1343 = vmatmul.f32.gmra.mxu0 %v1322
    %v1344 = vpop.f32.mrf.mxu0
    %v1345 = vadd.f32 %v1316, %v1344
    %1346 = vdwg.mxu0
    %v1347 = vmul.f32 %v1342, 0.5
    %v1348 = vmul.f32 %v1345, 0.5
    %v1349 = vmul.f32 %v1342, 0.044715
    %v1350 = vmul.f32 %v1345, 0.044715
    %v1351 = vmul.f32 %v1349, %v1342
    %v1352 = vmul.f32 %v1350, %v1345
    %v1353 = vmul.f32 %v1351, %v1342
    %v1354 = vmul.f32 %v1352, %v1345
    %v1355 = vadd.f32 %v1342, %v1353
    %v1356 = vadd.f32 %v1345, %v1354
    %v1357 = vmul.f32 %v1355, 0.7978846
    %v1358 = vmul.f32 %v1356, 0.7978846
    %v1359 = vtanh.pop %v1357
    %v1360 = vtanh.pop %v1358
    %v1361 = vadd.f32 %v1359, 1.0
    %v1362 = vadd.f32 %v1360, 1.0
    %v1363 = vmul.f32 %v1347, %v1361
    %v1364 = vmul.f32 %v1348, %v1362
    %s1365 = scalar_lea.vmem %s12, 64
    %v1366 = vld [vmem:[%s1365] sm:$0xff]
    %v1367 = vld [vmem:[%s1365 + $0x8] sm:$0xff]
    %v1368 = vld [vmem:[%s1365 + $0x10] sm:$0xff]
    %v1369 = vld [vmem:[%s1365 + $0x18] sm:$0xff]
    %v1370 = vld [vmem:[%s1365 + $0x20] sm:$0xff]
    %v1371 = vld [vmem:[%s1365 + $0x28] sm:$0xff]
    %v1372 = vld [vmem:[%s1365 + $0x30] sm:$0xff]
    %v1373 = vld [vmem:[%s1365 + $0x38] sm:$0xff]
    %s1374 = scalar_lea.vmem %s13, 1
    %v1375 = vld [vmem:[%s1374] sm:$0x1]
    %v1377 = vperm.slane %v1375, 0
    %v1380 = vsel %vm746, %v1363, 0
    %v1383 = vsel %vm746, %v1364, 0
    %1385 = vmatpush.msra.mxu0 0.0
    %1386 = vmatpush.msra.mxu0 0.0
    %1387 = vmatpush.msra.mxu0 0.0
    %1388 = vmatpush.msra.mxu0 0.0
    %1389 = vmatpush.msra.mxu0 0.0
    %1390 = vmatpush.msra.mxu0 0.0
    %1391 = vmatpush.msra.mxu0 0.0
    %1392 = vmatpush.msra.mxu0 0.0
    %1393 = vmatpush.msra.mxu0 %v1373
    %1394 = vmatpush.msra.mxu0 %v1372
    %1395 = vmatpush.msra.mxu0 %v1371
    %1396 = vmatpush.msra.mxu0 %v1370
    %1397 = vmatpush.msra.mxu0 %v1369
    %1398 = vmatpush.msra.mxu0 %v1368
    %1399 = vmatpush.msra.mxu0 %v1367
    %1400 = vmatpush.msra.mxu0 %v1366
    %1401 = vmatmul.f32.gmra.mxu0 %v1380
    %v1402 = vpop.f32.mrf.mxu0
    %v1403 = vadd.f32 %v1377, %v1402
    %1404 = vmatmul.f32.gmra.mxu0 %v1383
    %v1405 = vpop.f32.mrf.mxu0
    %v1406 = vadd.f32 %v1377, %v1405
    %1407 = vdwg.mxu0
    %v1408 = vadd.f32 %v1403, %v1306
    %v1409 = vadd.f32 %v1406, %v1307
    %s1410 = scalar_lea.vmem [#allocation12], 1
    %v1411 = vld [vmem:[%s1410] sm:$0x1]
    %s1412 = scalar_lea.vmem %s15, 1
    %v1413 = vld [vmem:[%s1412] sm:$0x1]
    %v1414 = vsel %vm146, %v1408, 0.0
    %1415 = vadd.xlane.f32.xlu0 %v1414
    %v1416 = vpop.xlane.xlu0 %1415
    %v1417 = vsel %vm146, %v1409, 0.0
    %1418 = vadd.xlane.f32.xlu0 %v1417
    %v1419 = vpop.xlane.xlu0 %1418
    %v1420 = vmul.f32 %v1416, %v159
    %v1421 = vmul.f32 %v1419, %v159
    %v1422 = vsub.f32 %v1408, %v1420
    %v1423 = vsub.f32 %v1409, %v1421
    %v1424 = vmul.f32 %v1422, %v1422
    %v1425 = vmul.f32 %v1423, %v1423
    %v1426 = vsel %vm146, %v1424, 0.0
    %1427 = vadd.xlane.f32.xlu0 %v1426
    %v1428 = vpop.xlane.xlu0 %1427
    %v1429 = vsel %vm146, %v1425, 0.0
    %1430 = vadd.xlane.f32.xlu0 %v1429
    %v1431 = vpop.xlane.xlu0 %1430
    %v1432 = vmul.f32 %v1428, %v159
    %v1433 = vmul.f32 %v1431, %v159
    %v1434 = vadd.f32 %v1432, 1e-12
    %v1435 = vadd.f32 %v1433, 1e-12
    %v1436 = vrsqrt.pop %v1434
    %v1437 = vmul.f32 %v1436, %v1434
    %v1438 = vmul.f32 %v1437, %v1436
    %v1439 = vmul.f32 0.5, %v1438
    %v1440 = vsub.f32 1.5, %v1439
    %v1441 = vmul.f32 %v1436, %v1440
    %vm1442 = vweird.f32 %v1434
    %vm1443 = vweird.f32 %v1436
    %vm1444 = vmor %vm1442, %vm1443
    %v1445 = vsel %vm1444, %v1436, %v1441
    %v1446 = vrsqrt.pop %v1435
    %v1447 = vmul.f32 %v1446, %v1435
    %v1448 = vmul.f32 %v1447, %v1446
    %v1449 = vmul.f32 0.5, %v1448
    %v1450 = vsub.f32 1.5, %v1449
    %v1451 = vmul.f32 %v1446, %v1450
    %vm1452 = vweird.f32 %v1435
    %vm1453 = vweird.f32 %v1446
    %vm1454 = vmor %vm1452, %vm1453
    %v1455 = vsel %vm1454, %v1446, %v1451
    %v1456 = vmul.f32 %v1422, %v1445
    %v1457 = vmul.f32 %v1423, %v1455
    %v1459 = vperm.slane %v1411, 0
    %v1461 = vmul.f32 %v1456, %v1459
    %v1462 = vmul.f32 %v1457, %v1459
    %v1464 = vperm.slane %v1413, 0
    %v1466 = vadd.f32 %v1461, %v1464
    %v1467 = vadd.f32 %v1462, %v1464
    %1468 = vst.msk [vmem:[#allocation14] sm:$0xff] %vm146, %v1466
    %1469 = vst.msk [vmem:[#allocation14 + $0x8] sm:$0xff] %vm146, %v1467
    // Predicated region
    $region90: #{tpu_custom_call.1} parent=1 // pred_check
      _
    $region91: #{tpu_custom_call.1} parent=1 // pred_check_branch
      %1471 = sbr.rel (0) target = $region93
    $region92: #{tpu_custom_call.1} parent=1 // pred_region
      %1473 = vsyncadd [#allocation5], 0
      %s1474 = sshll.u32 [#allocation14], 4
      %s1475 = int_to_ptr.vmem [resolvable:$true] %s1474
      %s1476 = sshll.u32 %s16, 4
      %s1477 = int_to_ptr.hbm [resolvable:$true] %s1476
      %1482 = dma.vmem_to_hbm [thread:$0]  %s1475, 256, %s1477, [#allocation5], 128, 128, 8
    $region93: #{tpu_custom_call.1} parent=1 // pred_fallthru
      _
    // Predicated region
    $region94: #{tpu_custom_call.1} parent=1 // pred_check
      _
    $region95: #{tpu_custom_call.1} parent=1 // pred_check_branch
      %1484 = sbr.rel (0) target = $region97
    $region96: #{tpu_custom_call.1} parent=1 // pred_region
      %1486 = dma.done [#allocation5], 256
    $region97: #{tpu_custom_call.1} parent=1 // pred_fallthru
      _
    %1487 = vsyncpa [#allocation4], 1
    %1488 = vsyncpa [#allocation7], 1
    %1489 = vsyncpa [#allocation10], 1
    %1490 = vsyncpa [#allocation13], 1
    %1491 = vsyncpa [#allocation5], 1

</llo_original>
